<compile_context>
chip_gen: v5e
topology: v5e:2x2
jax: 0.10.0
libtpu: 0.0.40
codegen_flags: <defaults>
</compile_context>

<pallas_src>
import numpy as np
import jax
import jax.numpy as jnp
from jax.experimental import pallas as pl
from jax.experimental.pallas import tpu as pltpu

EPS = 1e-5
LANE = 128
_VMEM_LIMIT = 32 * 1024 * 1024


def _round_up(x, m):
    return (x + m - 1) // m * m


def _pad_last(v, Cp):
    return jnp.pad(v, [(0, 0)] * (v.ndim - 1) + [(0, Cp - v.shape[-1])])


# ---------------------------------------------------------------------------
# Pallas kernels
# ---------------------------------------------------------------------------
def _make_conv3x3_kernel(H, W, Cin_p, Cout_p, fuse_bn_relu_input):
    """3x3 'same' conv of one NHWC image as 3 bf16 GEMMs (K=3*Cin_p, f32 acc).

    If `fuse_bn_relu_input`, y = relu(x*scale + shift) is applied to the input
    tile in-kernel (fusing the previous BatchNorm + ReLU).  Also emits per-image
    partial sum / sum-of-squares of the conv output, packed as [1, 2, Cout_p].
    """
    Cp = Cin_p

    def body(xf, w_ref, b_ref, y_ref, stats_ref, pad_ref):
        # xf: [H, W, Cin_p] f32 (already pre-activated if requested).
        # Build the W-shifted variants at value level in f32 (cheap, fully
        # supported sublane slicing), cast to bf16 once each at the store.
        zcol = jnp.zeros((H, 1, Cp), jnp.float32)
        left = jnp.concatenate([zcol, xf[:, :W - 1, :]], axis=1)   # x[., w-1]
        right = jnp.concatenate([xf[:, 1:, :], zcol], axis=1)      # x[., w+1]

        # Zero only the 1-row halo strips (interior is fully overwritten).
        # Re-zeroed every step on purpose: scratch is per-core under a
        # "parallel" batch axis, so a pl.when(program_id==0) guard is unsafe.
        zrow = jnp.zeros((1, W, 3 * Cp), jnp.bfloat16)
        pad_ref[0:1, :, :] = zrow
        pad_ref[H + 1:H + 2, :, :] = zrow

        # Lane-aligned channel-block stores; all ref offsets are on the
        # (untiled) leading H axis, so no masked/shifted vst on the sublanes.
        pad_ref[1:H + 1, :, 0:Cp] = left.astype(jnp.bfloat16)
        pad_ref[1:H + 1, :, Cp:2 * Cp] = xf.astype(jnp.bfloat16)
        pad_ref[1:H + 1, :, 2 * Cp:3 * Cp] = right.astype(jnp.bfloat16)

        # 3 GEMMs with K = 3*Cin_p; accumulator carried as a value (one store,
        # no per-tap VMEM read-modify-write; dots can chain on the MXU).
        acc = None
        for ky in range(3):
            tap = pad_ref[ky:ky + H, :, :].reshape(H * W, 3 * Cp)
            d = jnp.dot(tap, w_ref[ky], preferred_element_type=jnp.float32)
            acc = d if acc is None else acc + d

        y = acc + b_ref[...]                                  # [H*W, Cout_p] f32
        y_ref[...] = y.astype(jnp.bfloat16).reshape(1, H, W, Cout_p)

        # Per-image partial BN statistics (row 0: sum, row 1: sum of squares),
        # reduced outside in plain JAX -> the batch grid axis stays parallel.
        s = jnp.sum(y, axis=0, keepdims=True)
        q = jnp.sum(y * y, axis=0, keepdims=True)
        stats_ref[...] = jnp.concatenate([s, q], axis=0)[None]

    if fuse_bn_relu_input:
        def kernel(x_ref, sc_ref, sh_ref, w_ref, b_ref,
                   y_ref, stats_ref, pad_ref):
            sc = sc_ref[...].reshape(1, 1, Cp)
            sh = sh_ref[...].reshape(1, 1, Cp)
            xf = jnp.maximum(x_ref[0].astype(jnp.float32) * sc + sh, 0.0)
            body(xf, w_ref, b_ref, y_ref, stats_ref, pad_ref)
    else:
        def kernel(x_ref, w_ref, b_ref, y_ref, stats_ref, pad_ref):
            body(x_ref[0].astype(jnp.float32),
                 w_ref, b_ref, y_ref, stats_ref, pad_ref)

    return kernel


def _bn_add_relu_kernel(y_ref, sc_ref, sh_ref, res_ref, o_ref):
    o_ref[...] = jnp.maximum(
        y_ref[...].astype(jnp.float32) * sc_ref[...] + sh_ref[...]
        + res_ref[...], 0.0)


# ---------------------------------------------------------------------------
# Pallas wrappers
# ---------------------------------------------------------------------------
def conv3x3_bn_stats(x_p, w3, bias_p, scale=None, shift=None):
    """x_p: [N,H,W,Cin_p] bf16, w3: [3, 3*Cin_p, Cout_p] bf16, bias_p: [1,Cout_p].

    Returns (y [N,H,W,Cout_p] bf16, stats [N,2,Cout_p] f32 = per-image
    (sum, sumsq)).  Optional (scale, shift) shaped [1, Cin_p] fuse the previous
    BN+ReLU onto the conv input inside the kernel.
    """
    N, H, W, Cin_p = x_p.shape
    Cout_p = w3.shape[-1]
    fuse = scale is not None

    kernel = _make_conv3x3_kernel(H, W, Cin_p, Cout_p, fuse)

    in_specs = [pl.BlockSpec((1, H, W, Cin_p), lambda n: (n, 0, 0, 0))]
    args = [x_p]
    if fuse:
        in_specs += [pl.BlockSpec((1, Cin_p), lambda n: (0, 0)),
                     pl.BlockSpec((1, Cin_p), lambda n: (0, 0))]
        args += [scale, shift]
    in_specs += [pl.BlockSpec((3, 3 * Cin_p, Cout_p), lambda n: (0, 0, 0)),
                 pl.BlockSpec((1, Cout_p), lambda n: (0, 0))]
    args += [w3, bias_p]

    return pl.pallas_call(
        kernel,
        out_shape=(jax.ShapeDtypeStruct((N, H, W, Cout_p), jnp.bfloat16),
                   jax.ShapeDtypeStruct((N, 2, Cout_p), jnp.float32)),
        grid_spec=pltpu.PrefetchScalarGridSpec(
            num_scalar_prefetch=0,
            grid=(N,),
            in_specs=in_specs,
            out_specs=(pl.BlockSpec((1, H, W, Cout_p), lambda n: (n, 0, 0, 0)),
                       pl.BlockSpec((1, 2, Cout_p), lambda n: (n, 0, 0))),
            scratch_shapes=[pltpu.VMEM((H + 2, W, 3 * Cin_p), jnp.bfloat16)]),
        # Stats are per-tile partials -> safe to shard the batch axis.
        compiler_params=pltpu.CompilerParams(
            dimension_semantics=("parallel",),
            vmem_limit_bytes=_VMEM_LIMIT),
    )(*args)


def bn_add_relu(y2d, scale, shift, res2d):
    """out = relu(y*scale + shift + residual); lane-dense [M, Cp] layout."""
    M, Cp = y2d.shape
    # Byte-capped tile: bf16 y + f32 residual + f32 out, double-buffered.
    bytes_per_row = Cp * (y2d.dtype.itemsize + res2d.dtype.itemsize + 4)
    budget = 8 * 1024 * 1024
    tm = None
    for t in (4096, 2048, 1024, 512, 256, 128, 64, 32, 16, 8):
        if M % t == 0 and 2 * t * bytes_per_row <= budget:
            tm = t
            break
    if tm is None:  # awkward M: cdiv grid, Pallas masks the tail block
        tm = max(8, min(M, budget // (2 * bytes_per_row)))
    return pl.pallas_call(
        _bn_add_relu_kernel,
        out_shape=jax.ShapeDtypeStruct((M, Cp), jnp.float32),
        grid_spec=pltpu.PrefetchScalarGridSpec(
            num_scalar_prefetch=0,
            grid=(pl.cdiv(M, tm),),
            in_specs=[pl.BlockSpec((tm, Cp), lambda i: (i, 0)),
                      pl.BlockSpec((1, Cp), lambda i: (0, 0)),
                      pl.BlockSpec((1, Cp), lambda i: (0, 0)),
                      pl.BlockSpec((tm, Cp), lambda i: (i, 0))],
            out_specs=pl.BlockSpec((tm, Cp), lambda i: (i, 0))),
        compiler_params=pltpu.CompilerParams(
            dimension_semantics=("parallel",),
            vmem_limit_bytes=_VMEM_LIMIT),
    )(y2d, scale, shift, res2d)


# ---------------------------------------------------------------------------
# Plain-JAX glue (layout / parameter packing / tiny BN reductions)
# ---------------------------------------------------------------------------
def weight_to_k3(w_oihw, Cin_p, Cout_p):
    """[Cout, Cin, 3, 3] -> bf16 [3, 3*Cin_p, Cout_p]; index [ky][kx*Cin_p+c, o]."""
    Cout, Cin = w_oihw.shape[:2]
    w = jnp.transpose(w_oihw, (2, 3, 1, 0))            # [ky, kx, Cin, Cout]
    w = jnp.pad(w, ((0, 0), (0, 0), (0, Cin_p - Cin), (0, Cout_p - Cout)))
    return w.reshape(3, 3 * Cin_p, Cout_p).astype(jnp.bfloat16)


def _bn_affine(stats, gamma_p, beta_p, count):
    """Reduce per-image partial stats and build the per-channel affine."""
    s = jnp.sum(stats[:, 0, :], axis=0)
    q = jnp.sum(stats[:, 1, :], axis=0)
    mean = s / count
    var = jnp.maximum(q / count - mean * mean, 0.0)     # biased var (PyTorch BN)
    inv = gamma_p / jnp.sqrt(var + EPS)
    shift = beta_p - mean * inv
    return inv.reshape(1, -1), shift.reshape(1, -1)


def residual_block_forward(x_nchw, params):
    """ResidualBlock.forward (stride=1, downsample=None, training-mode BN)."""
    N, Cin, H, W = x_nchw.shape
    Cout = params["w1"].shape[0]
    assert Cin == Cout, "identity residual requires in_channels == out_channels"
    Cp = _round_up(max(Cin, Cout, LANE), LANE)          # lane-dense channel dim
    M = N * H * W
    count = jnp.float32(M)

    # NCHW -> NHWC, zero-pad channels to a multiple of 128 (XLA glue).
    x_nhwc = jnp.transpose(x_nchw, (0, 2, 3, 1))
    x_f32 = _pad_last(x_nhwc, Cp)                       # residual path (f32)
    x_bf16 = x_f32.astype(jnp.bfloat16)                 # conv1 input (bf16 read)

    w1 = weight_to_k3(params["w1"], Cp, Cp)
    w2 = weight_to_k3(params["w2"], Cp, Cp)
    b1 = _pad_last(params["b1"], Cp).reshape(1, Cp)
    b2 = _pad_last(params["b2"], Cp).reshape(1, Cp)
    g1, be1 = _pad_last(params["g1"], Cp), _pad_last(params["be1"], Cp)
    g2, be2 = _pad_last(params["g2"], Cp), _pad_last(params["be2"], Cp)

    # conv1 (+ partial batch stats).  BN1+ReLU is fused into the conv2 kernel.
    y1, st1 = conv3x3_bn_stats(x_bf16, w1, b1)
    inv1, shift1 = _bn_affine(st1, g1, be1, count)

    # conv2 with fused BN1+ReLU on its input (+ partial batch stats of y2).
    y2, st2 = conv3x3_bn_stats(y1, w2, b2, scale=inv1, shift=shift1)
    inv2, shift2 = _bn_affine(st2, g2, be2, count)

    # BN2 + residual add + ReLU (single fused lane-dense elementwise pass).
    out = bn_add_relu(y2.reshape(M, Cp), inv2, shift2, x_f32.reshape(M, Cp))

    out = out.reshape(N, H, W, Cp)[..., :Cout]
    return jnp.transpose(out, (0, 3, 1, 2))             # back to NCHW


# ---------------------------------------------------------------------------
# Pure-JAX reference (for correctness check only)
# ---------------------------------------------------------------------------
def reference_forward(x, p):
    def conv(x, w, b):
        y = jax.lax.conv_general_dilated(
            x, w, (1, 1), ((1, 1), (1, 1)),
            dimension_numbers=("NCHW", "OIHW", "NCHW"))
        return y + b[None, :, None, None]

    def bn(x, g, be):
        mean = jnp.mean(x, axis=(0, 2, 3), keepdims=True)
        var = jnp.var(x, axis=(0, 2, 3), keepdims=True)
        return ((x - mean) / jnp.sqrt(var + EPS)) * g[None, :, None, None] \
            + be[None, :, None, None]

    out = jax.nn.relu(bn(conv(x, p["w1"], p["b1"]), p["g1"], p["be1"]))
    out = bn(conv(out, p["w2"], p["b2"]), p["g2"], p["be2"])
    return jax.nn.relu(out + x)


# ---------------------------------------------------------------------------
if __name__ == "__main__":
    key = jax.random.PRNGKey(0)
    kx, k1, k2, kb1, kb2 = jax.random.split(key, 5)

    N, C, H, W = 2, 8, 16, 16                    # in_channels == out_channels
    x = jax.random.normal(kx, (N, C, H, W), dtype=jnp.float32)

    params = {
        "w1": 0.1 * jax.random.normal(k1, (C, C, 3, 3), dtype=jnp.float32),
        "b1": 0.05 * jax.random.normal(kb1, (C,), dtype=jnp.float32),
        "g1": jnp.ones((C,), jnp.float32),
        "be1": jnp.zeros((C,), jnp.float32),
        "w2": 0.1 * jax.random.normal(k2, (C, C, 3, 3), dtype=jnp.float32),
        "b2": 0.05 * jax.random.normal(kb2, (C,), dtype=jnp.float32),
        "g2": jnp.ones((C,), jnp.float32),
        "be2": jnp.zeros((C,), jnp.float32),
    }

    out = jax.block_until_ready(residual_block_forward(x, params))
    ref = jax.block_until_ready(reference_forward(x, params))

    assert out.shape == (N, C, H, W)
    assert bool(jnp.all(jnp.isfinite(out)))
    assert np.allclose(np.asarray(out), np.asarray(ref), rtol=2e-2, atol=2e-2), \
        "Pallas output does not match JAX reference"
    print("KERNEL_OK")
</pallas_src>

<mosaic_0001>
module attributes {stable_mosaic.version = 11 : i64} {
  func.func @kernel(%arg0: i32, %arg1: memref<1x16x16x128xbf16, #tpu.memory_space<vmem>>, %arg2: memref<3x384x128xbf16, #tpu.memory_space<vmem>>, %arg3: memref<1x128xf32, #tpu.memory_space<vmem>>, %arg4: memref<1x16x16x128xbf16, #tpu.memory_space<vmem>>, %arg5: memref<1x2x128xf32, #tpu.memory_space<vmem>>, %arg6: memref<18x16x384xbf16, #tpu.memory_space<vmem>>) attributes {dimension_semantics = [#tpu.dimension_semantics<parallel>], iteration_bounds = array<i64: 2>, scalar_prefetch = 0 : i64, scratch_operands = 1 : i64, tpu.core_type = #tpu.core_type<tc>, window_params = [{transform_indices = @transform_0, window_bounds = array<i64: 1, 16, 16, 128>}, {pipeline_mode = #tpu.pipeline_mode<synchronous>, transform_indices = @transform_1, window_bounds = array<i64: 3, 384, 128>}, {pipeline_mode = #tpu.pipeline_mode<synchronous>, transform_indices = @transform_2, window_bounds = array<i64: 1, 128>}, {transform_indices = @transform_3, window_bounds = array<i64: 1, 16, 16, 128>}, {transform_indices = @transform_4, window_bounds = array<i64: 1, 2, 128>}]} {
    %c0 = arith.constant 0 : index
    %c0_0 = arith.constant 0 : index
    %c0_1 = arith.constant 0 : index
    %c0_2 = arith.constant 0 : index
    %0 = vector.load %arg1[%c0, %c0_0, %c0_1, %c0_2] : memref<1x16x16x128xbf16, #tpu.memory_space<vmem>>, vector<1x16x16x128xbf16>
    %1 = vector.shape_cast %0 : vector<1x16x16x128xbf16> to vector<16x16x128xbf16>
    %2 = arith.extf %1 : vector<16x16x128xbf16> to vector<16x16x128xf32>
    %cst = arith.constant 0.000000e+00 : f32
    %3 = vector.broadcast %cst : f32 to vector<16x1x128xf32>
    %4 = vector.extract_strided_slice %2 {offsets = [0, 0, 0], sizes = [16, 15, 128], strides = [1, 1, 1]} : vector<16x16x128xf32> to vector<16x15x128xf32>
    %5 = tpu.concatenate %3, %4 in 1 : vector<16x1x128xf32>, vector<16x15x128xf32> -> vector<16x16x128xf32>
    %6 = vector.extract_strided_slice %2 {offsets = [0, 1, 0], sizes = [16, 15, 128], strides = [1, 1, 1]} : vector<16x16x128xf32> to vector<16x15x128xf32>
    %7 = tpu.concatenate %6, %3 in 1 : vector<16x15x128xf32>, vector<16x1x128xf32> -> vector<16x16x128xf32>
    %cst_3 = arith.constant 0.000000e+00 : bf16
    %8 = vector.broadcast %cst_3 : bf16 to vector<1x16x384xbf16>
    %c0_4 = arith.constant 0 : index
    %c0_5 = arith.constant 0 : index
    %c0_6 = arith.constant 0 : index
    %9 = vector.load %arg6[%c0_4, %c0_5, %c0_6] : memref<18x16x384xbf16, #tpu.memory_space<vmem>>, vector<1x16x384xbf16>
    tpu.vector_store %arg6[%c0_4, %c0_5, %c0_6], %8 {strides = array<i32>} : memref<18x16x384xbf16, #tpu.memory_space<vmem>>, vector<1x16x384xbf16>,
    %c17 = arith.constant 17 : index
    %c0_7 = arith.constant 0 : index
    %c0_8 = arith.constant 0 : index
    %10 = vector.load %arg6[%c17, %c0_7, %c0_8] : memref<18x16x384xbf16, #tpu.memory_space<vmem>>, vector<1x16x384xbf16>
    tpu.vector_store %arg6[%c17, %c0_7, %c0_8], %8 {strides = array<i32>} : memref<18x16x384xbf16, #tpu.memory_space<vmem>>, vector<1x16x384xbf16>,
    %11 = arith.truncf %5 : vector<16x16x128xf32> to vector<16x16x128xbf16>
    %c1 = arith.constant 1 : index
    %c0_9 = arith.constant 0 : index
    %c0_10 = arith.constant 0 : index
    %12 = vector.load %arg6[%c1, %c0_9, %c0_10] : memref<18x16x384xbf16, #tpu.memory_space<vmem>>, vector<16x16x128xbf16>
    tpu.vector_store %arg6[%c1, %c0_9, %c0_10], %11 {strides = array<i32>} : memref<18x16x384xbf16, #tpu.memory_space<vmem>>, vector<16x16x128xbf16>,
    %13 = arith.truncf %2 : vector<16x16x128xf32> to vector<16x16x128xbf16>
    %c1_11 = arith.constant 1 : index
    %c0_12 = arith.constant 0 : index
    %c128 = arith.constant 128 : index
    %14 = vector.load %arg6[%c1_11, %c0_12, %c128] : memref<18x16x384xbf16, #tpu.memory_space<vmem>>, vector<16x16x128xbf16>
    tpu.vector_store %arg6[%c1_11, %c0_12, %c128], %13 {strides = array<i32>} : memref<18x16x384xbf16, #tpu.memory_space<vmem>>, vector<16x16x128xbf16>,
    %15 = arith.truncf %7 : vector<16x16x128xf32> to vector<16x16x128xbf16>
    %c1_13 = arith.constant 1 : index
    %c0_14 = arith.constant 0 : index
    %c256 = arith.constant 256 : index
    %16 = vector.load %arg6[%c1_13, %c0_14, %c256] : memref<18x16x384xbf16, #tpu.memory_space<vmem>>, vector<16x16x128xbf16>
    tpu.vector_store %arg6[%c1_13, %c0_14, %c256], %15 {strides = array<i32>} : memref<18x16x384xbf16, #tpu.memory_space<vmem>>, vector<16x16x128xbf16>,
    %c0_15 = arith.constant 0 : index
    %c0_16 = arith.constant 0 : index
    %c0_17 = arith.constant 0 : index
    %17 = vector.load %arg6[%c0_15, %c0_16, %c0_17] : memref<18x16x384xbf16, #tpu.memory_space<vmem>>, vector<16x16x384xbf16>
    %18 = vector.shape_cast %17 : vector<16x16x384xbf16> to vector<256x384xbf16>
    %c0_18 = arith.constant 0 : index
    %c0_19 = arith.constant 0 : index
    %c0_20 = arith.constant 0 : index
    %19 = vector.load %arg2[%c0_18, %c0_19, %c0_20] : memref<3x384x128xbf16, #tpu.memory_space<vmem>>, vector<1x384x128xbf16>
    %20 = vector.shape_cast %19 : vector<1x384x128xbf16> to vector<384x128xbf16>
    %cst_21 = arith.constant dense<0.000000e+00> : vector<256x128xf32>
    %21 = tpu.matmul %18, %20, %cst_21 {dimension_numbers = #tpu.dot_dimension_numbers<[1], [0], [0], [1], [0, 0, 1, 1], [], []>} : vector<256x384xbf16>, vector<384x128xbf16>, vector<256x128xf32> -> vector<256x128xf32>
    %c1_22 = arith.constant 1 : index
    %c0_23 = arith.constant 0 : index
    %c0_24 = arith.constant 0 : index
    %22 = vector.load %arg6[%c1_22, %c0_23, %c0_24] : memref<18x16x384xbf16, #tpu.memory_space<vmem>>, vector<16x16x384xbf16>
    %23 = vector.shape_cast %22 : vector<16x16x384xbf16> to vector<256x384xbf16>
    %c1_25 = arith.constant 1 : index
    %c0_26 = arith.constant 0 : index
    %c0_27 = arith.constant 0 : index
    %24 = vector.load %arg2[%c1_25, %c0_26, %c0_27] : memref<3x384x128xbf16, #tpu.memory_space<vmem>>, vector<1x384x128xbf16>
    %25 = vector.shape_cast %24 : vector<1x384x128xbf16> to vector<384x128xbf16>
    %cst_28 = arith.constant dense<0.000000e+00> : vector<256x128xf32>
    %26 = tpu.matmul %23, %25, %cst_28 {dimension_numbers = #tpu.dot_dimension_numbers<[1], [0], [0], [1], [0, 0, 1, 1], [], []>} : vector<256x384xbf16>, vector<384x128xbf16>, vector<256x128xf32> -> vector<256x128xf32>
    %27 = arith.addf %21, %26 : vector<256x128xf32>
    %c2 = arith.constant 2 : index
    %c0_29 = arith.constant 0 : index
    %c0_30 = arith.constant 0 : index
    %28 = vector.load %arg6[%c2, %c0_29, %c0_30] : memref<18x16x384xbf16, #tpu.memory_space<vmem>>, vector<16x16x384xbf16>
    %29 = vector.shape_cast %28 : vector<16x16x384xbf16> to vector<256x384xbf16>
    %c2_31 = arith.constant 2 : index
    %c0_32 = arith.constant 0 : index
    %c0_33 = arith.constant 0 : index
    %30 = vector.load %arg2[%c2_31, %c0_32, %c0_33] : memref<3x384x128xbf16, #tpu.memory_space<vmem>>, vector<1x384x128xbf16>
    %31 = vector.shape_cast %30 : vector<1x384x128xbf16> to vector<384x128xbf16>
    %cst_34 = arith.constant dense<0.000000e+00> : vector<256x128xf32>
    %32 = tpu.matmul %29, %31, %cst_34 {dimension_numbers = #tpu.dot_dimension_numbers<[1], [0], [0], [1], [0, 0, 1, 1], [], []>} : vector<256x384xbf16>, vector<384x128xbf16>, vector<256x128xf32> -> vector<256x128xf32>
    %33 = arith.addf %27, %32 : vector<256x128xf32>
    %c0_35 = arith.constant 0 : index
    %c0_36 = arith.constant 0 : index
    %34 = vector.load %arg3[%c0_35, %c0_36] : memref<1x128xf32, #tpu.memory_space<vmem>>, vector<1x128xf32>
    %35 = vector.broadcast %34 : vector<1x128xf32> to vector<256x128xf32>
    %36 = arith.addf %33, %35 : vector<256x128xf32>
    %37 = arith.truncf %36 : vector<256x128xf32> to vector<256x128xbf16>
    %38 = vector.shape_cast %37 : vector<256x128xbf16> to vector<1x16x16x128xbf16>
    %c0_37 = arith.constant 0 : index
    %c0_38 = arith.constant 0 : index
    %c0_39 = arith.constant 0 : index
    %c0_40 = arith.constant 0 : index
    %39 = vector.load %arg4[%c0_37, %c0_38, %c0_39, %c0_40] : memref<1x16x16x128xbf16, #tpu.memory_space<vmem>>, vector<1x16x16x128xbf16>
    tpu.vector_store %arg4[%c0_37, %c0_38, %c0_39, %c0_40], %38 {strides = array<i32>} : memref<1x16x16x128xbf16, #tpu.memory_space<vmem>>, vector<1x16x16x128xbf16>,
    %cst_41 = arith.constant dense<0.000000e+00> : vector<128xf32>
    %40 = vector.multi_reduction <add>, %36, %cst_41 [0] : vector<256x128xf32> to vector<128xf32>
    %41 = vector.shape_cast %40 : vector<128xf32> to vector<1x128xf32>
    %42 = arith.mulf %36, %36 : vector<256x128xf32>
    %cst_42 = arith.constant dense<0.000000e+00> : vector<128xf32>
    %43 = vector.multi_reduction <add>, %42, %cst_42 [0] : vector<256x128xf32> to vector<128xf32>
    %44 = vector.shape_cast %43 : vector<128xf32> to vector<1x128xf32>
    %45 = tpu.concatenate %41, %44 in 0 : vector<1x128xf32>, vector<1x128xf32> -> vector<2x128xf32>
    %46 = vector.shape_cast %45 : vector<2x128xf32> to vector<1x2x128xf32>
    %c0_43 = arith.constant 0 : index
    %c0_44 = arith.constant 0 : index
    %c0_45 = arith.constant 0 : index
    %47 = vector.load %arg5[%c0_43, %c0_44, %c0_45] : memref<1x2x128xf32, #tpu.memory_space<vmem>>, vector<1x2x128xf32>
    tpu.vector_store %arg5[%c0_43, %c0_44, %c0_45], %46 {strides = array<i32>} : memref<1x2x128xf32, #tpu.memory_space<vmem>>, vector<1x2x128xf32>,
    return
  }
  func.func @transform_0(%arg0: i32) -> (i32, i32, i32, i32) {
    %c0_i32 = arith.constant 0 : i32
    %c0_i32_0 = arith.constant 0 : i32
    %c0_i32_1 = arith.constant 0 : i32
    %c0_i32_2 = arith.constant 0 : i32
    return %arg0, %c0_i32, %c0_i32_0, %c0_i32_1 : i32, i32, i32, i32
  }
  func.func @transform_1(%arg0: i32) -> (i32, i32, i32) {
    %c0_i32 = arith.constant 0 : i32
    %c0_i32_0 = arith.constant 0 : i32
    %c0_i32_1 = arith.constant 0 : i32
    %c0_i32_2 = arith.constant 0 : i32
    return %c0_i32, %c0_i32_0, %c0_i32_1 : i32, i32, i32
  }
  func.func @transform_2(%arg0: i32) -> (i32, i32) {
    %c0_i32 = arith.constant 0 : i32
    %c0_i32_0 = arith.constant 0 : i32
    %c0_i32_1 = arith.constant 0 : i32
    return %c0_i32, %c0_i32_0 : i32, i32
  }
  func.func @transform_3(%arg0: i32) -> (i32, i32, i32, i32) {
    %c0_i32 = arith.constant 0 : i32
    %c0_i32_0 = arith.constant 0 : i32
    %c0_i32_1 = arith.constant 0 : i32
    %c0_i32_2 = arith.constant 0 : i32
    return %arg0, %c0_i32, %c0_i32_0, %c0_i32_1 : i32, i32, i32, i32
  }
  func.func @transform_4(%arg0: i32) -> (i32, i32, i32) {
    %c0_i32 = arith.constant 0 : i32
    %c0_i32_0 = arith.constant 0 : i32
    %c0_i32_1 = arith.constant 0 : i32
    return %arg0, %c0_i32, %c0_i32_0 : i32, i32, i32
  }
}

</mosaic_0001>

<llo_original>
// kernel: tpu_custom_call.1
$region0: #{tpu_custom_call.1}
  #allocation0 [shape = 'u32[]', space=smem, size = 0x4, offset = 0x4, fixed_abs, tag = 'smem constant byte address 0x4 - core index']
  #allocation1 [shape = 'u32[72,128]{1,0:T(1,128)}', space=vmem, size = 0x9000, scoped, tag = 'internal scratch']
  #allocation2 [shape = 'bf16[18,16,384]{2,1,0:T(8,128)(2,1)}', space=vmem, size = 0x36000, scoped, tag = 'scratch operand']
  %s0 = inlined_call_operand.hbm [shape: bf16[2,16,16,128], index: 0, kind: input, shape index: {}]
  %s1 = inlined_call_operand.hbm [shape: bf16[3,384,128], index: 1, kind: input, shape index: {}]
  %s2 = inlined_call_operand.vmem [shape: f32[1,128], index: 2, kind: input, shape index: {}]
  %s3 = inlined_call_operand.hbm [shape: bf16[2,16,16,128], index: 3, kind: output, shape index: {0}]
  %s4 = inlined_call_operand.hbm [shape: f32[2,2,128], index: 4, kind: output, shape index: {1}]
  %5 = xla_tuple %s3, %s4
  %s6 = sld [smem:[#allocation0]]
  $region61: #{tpu_custom_call.1} parent=0
    _
  %s8 = ssub.s32 1, %s6
  %s9 = scalar_select 0, %s8, %s6
  $region1: #{tpu_custom_call.1} parent=0
    #allocation3 [shape = 'u8[131072]{0}', space=vmem, size = 0x20000, scoped, tag = 'input window, operand 0']
    #allocation4 [shape = 's32[2]{0}', space=sflag, size = 0x8, scoped, tag = 'scoped memory for tpu_custom_call.1']
    #allocation5 [shape = 's32[2]{0}', space=sflag, size = 0x8, scoped, tag = 'scoped memory for tpu_custom_call.1']
    #allocation6 [shape = 'u8[294912]{0}', space=vmem, size = 0x48000, scoped, tag = 'input window, operand 1, single buffered']
    #allocation7 [shape = 's32[1]{0}', space=sflag, size = 0x4, scoped, tag = 'scoped memory for tpu_custom_call.1']
    #allocation8 [shape = 'u8[131072]{0}', space=vmem, size = 0x20000, scoped, tag = 'output window, operand 0']
    #allocation9 [shape = 'u8[2048]{0}', space=vmem, size = 0x800, scoped, tag = 'output window, operand 1']
    #allocation10 [shape = 's32[2]{0}', space=sflag, size = 0x8, scoped, tag = 'scoped memory for tpu_custom_call.1']
    %10 = vsyncpa [#allocation4], 0
    %s11 = scalar_lea.sflag [#allocation4], 1
    %12 = vsyncpa %s11, 0
    %13 = vsyncpa [#allocation7], 0
    %14 = vsyncpa [#allocation5], 0
    %s15 = scalar_lea.sflag [#allocation5], 1
    %16 = vsyncpa %s15, 0
    %17 = vsyncpa [#allocation10], 0
    %s18 = scalar_lea.sflag [#allocation10], 1
    %19 = vsyncpa %s18, 0
    loop: start=0, step=1, limit=4
    $region2: #{tpu_custom_call.1} parent=1 // loop_pre_header
      _
    $region3: #{tpu_custom_call.1} parent=1 // loop_header
      %s21 = sphi 0, %s25
      %p22 = scmp.ge.s32.totalorder %s21, 4
      %s31 = sphi 0, %s33
      %s34 = sphi 0, %s31
      %s35 = sphi 0, %s34
      %s51 = sphi 0, %s35
      %s55 = sphi 0, %s55
      %s57 = sphi 0, %s55
      %s58 = sphi 0, %s57
      %s72 = sphi 0, %s58
      %s76 = sphi 0, %s76
      %s78 = sphi 0, %s76
      %s79 = sphi 0, %s78
      %s93 = sphi 0, %s79
      %s99 = sphi 0, %s101
      %s102 = sphi 0, %s99
      %s103 = sphi 0, %s102
      %s119 = sphi 0, %s103
      %s125 = sphi 0, %s127
      %s128 = sphi 0, %s125
      %s129 = sphi 0, %s128
      %s145 = sphi 0, %s129
    $region4: #{tpu_custom_call.1} parent=1 // loop_header_branch
      %24 = sbr.rel (%p22) target = $region8
    $region5: #{tpu_custom_call.1} parent=1 // loop_body
      %s26 = ssub.s32 %s21, 1
      %s27 = ssub.s32 %s21, 2
      %s28 = sadd.s32 %s21, 1
      %s29 = ssub.s32 %s21, %s28
      %p30 = scmp.eq.s32.totalorder %s29, 0
      %s32 = sadd.s32 %s31, 1
      %s33 = scalar_select %p30, %s31, %s32
      %p36 = pneg %p30
      %p37 = scmp.eq.s32.totalorder %s21, 1
      %p38 = por %p36, %p37
      %p39 = scmp.ne.s32.totalorder %s31, %s34
      %p40 = scmp.eq.s32.totalorder %s21, 0
      %p41 = por %p39, %p40
      %p42 = scmp.ne.s32.totalorder %s31, %s34
      %p43 = scmp.eq.s32.totalorder %s26, 1
      %p44 = por %p42, %p43
      %p45 = scmp.ne.s32.totalorder %s34, %s35
      %p46 = scmp.eq.s32.totalorder %s26, 0
      %p47 = por %p45, %p46
      %p48 = scmp.ne.s32.totalorder %s34, %s35
      %p49 = scmp.eq.s32.totalorder %s27, 1
      %p50 = por %p48, %p49
      %p52 = scmp.ne.s32.totalorder %s35, %s51
      %p53 = scmp.eq.s32.totalorder %s27, 0
      %p54 = por %p52, %p53
      %s56 = sadd.s32 %s55, 1
      %p59 = scmp.eq.s32.totalorder %s21, 1
      %p60 = scmp.ne.s32.totalorder %s55, %s57
      %p61 = scmp.eq.s32.totalorder %s21, 0
      %p62 = por %p60, %p61
      %p63 = scmp.ne.s32.totalorder %s55, %s57
      %p64 = scmp.eq.s32.totalorder %s26, 1
      %p65 = por %p63, %p64
      %p66 = scmp.ne.s32.totalorder %s57, %s58
      %p67 = scmp.eq.s32.totalorder %s26, 0
      %p68 = por %p66, %p67
      %p69 = scmp.ne.s32.totalorder %s57, %s58
      %p70 = scmp.eq.s32.totalorder %s27, 1
      %p71 = por %p69, %p70
      %p73 = scmp.ne.s32.totalorder %s58, %s72
      %p74 = scmp.eq.s32.totalorder %s27, 0
      %p75 = por %p73, %p74
      %s77 = sadd.s32 %s76, 1
      %p80 = scmp.eq.s32.totalorder %s21, 1
      %p81 = scmp.ne.s32.totalorder %s76, %s78
      %p82 = scmp.eq.s32.totalorder %s21, 0
      %p83 = por %p81, %p82
      %p84 = scmp.ne.s32.totalorder %s76, %s78
      %p85 = scmp.eq.s32.totalorder %s26, 1
      %p86 = por %p84, %p85
      %p87 = scmp.ne.s32.totalorder %s78, %s79
      %p88 = scmp.eq.s32.totalorder %s26, 0
      %p89 = por %p87, %p88
      %p90 = scmp.ne.s32.totalorder %s78, %s79
      %p91 = scmp.eq.s32.totalorder %s27, 1
      %p92 = por %p90, %p91
      %p94 = scmp.ne.s32.totalorder %s79, %s93
      %p95 = scmp.eq.s32.totalorder %s27, 0
      %p96 = por %p94, %p95
      %s97 = ssub.s32 %s21, %s28
      %p98 = scmp.eq.s32.totalorder %s97, 0
      %s100 = sadd.s32 %s99, 1
      %s101 = scalar_select %p98, %s99, %s100
      %p104 = pneg %p98
      %p105 = scmp.eq.s32.totalorder %s21, 1
      %p106 = por %p104, %p105
      %p107 = scmp.ne.s32.totalorder %s99, %s102
      %p108 = scmp.eq.s32.totalorder %s21, 0
      %p109 = por %p107, %p108
      %p110 = scmp.ne.s32.totalorder %s99, %s102
      %p111 = scmp.eq.s32.totalorder %s26, 1
      %p112 = por %p110, %p111
      %p113 = scmp.ne.s32.totalorder %s102, %s103
      %p114 = scmp.eq.s32.totalorder %s26, 0
      %p115 = por %p113, %p114
      %p116 = scmp.ne.s32.totalorder %s102, %s103
      %p117 = scmp.eq.s32.totalorder %s27, 1
      %p118 = por %p116, %p117
      %p120 = scmp.ne.s32.totalorder %s103, %s119
      %p121 = scmp.eq.s32.totalorder %s27, 0
      %p122 = por %p120, %p121
      %s123 = ssub.s32 %s21, %s28
      %p124 = scmp.eq.s32.totalorder %s123, 0
      %s126 = sadd.s32 %s125, 1
      %s127 = scalar_select %p124, %s125, %s126
      %p130 = pneg %p124
      %p131 = scmp.eq.s32.totalorder %s21, 1
      %p132 = por %p130, %p131
      %p133 = scmp.ne.s32.totalorder %s125, %s128
      %p134 = scmp.eq.s32.totalorder %s21, 0
      %p135 = por %p133, %p134
      %p136 = scmp.ne.s32.totalorder %s125, %s128
      %p137 = scmp.eq.s32.totalorder %s26, 1
      %p138 = por %p136, %p137
      %p139 = scmp.ne.s32.totalorder %s128, %s129
      %p140 = scmp.eq.s32.totalorder %s26, 0
      %p141 = por %p139, %p140
      %p142 = scmp.ne.s32.totalorder %s128, %s129
      %p143 = scmp.eq.s32.totalorder %s27, 1
      %p144 = por %p142, %p143
      %p146 = scmp.ne.s32.totalorder %s129, %s145
      %p147 = scmp.eq.s32.totalorder %s27, 0
      %p148 = por %p146, %p147
      %p149 = scmp.le.s32.totalorder 1, %s21
      %p150 = scmp.lt.s32.totalorder %s21, 3
      %p151 = pnand %p149, %p150
      %p152 = pneg %p151
      // Predicated region
      $region9: #{tpu_custom_call.1} parent=5 // pred_check
        _
      $region10: #{tpu_custom_call.1} parent=5 // pred_check_branch
        %154 = sbr.rel (%p151) target = $region12
      $region11: #{tpu_custom_call.1} parent=5 // pred_region
        %s155 = ssub.s32 %s21, 1
        // Predicated region
        $region13: #{tpu_custom_call.1} parent=11 // pred_check
          %p156 = pneg %p68
        $region14: #{tpu_custom_call.1} parent=11 // pred_check_branch
          %158 = sbr.rel (%p156) target = $region16
        $region15: #{tpu_custom_call.1} parent=11 // pred_region
          %160 = vsyncadd [#allocation7], 0
          %s161 = sshll.u32 %s1, 4
          %s162 = int_to_ptr.hbm [resolvable:$true] %s161
          %s163 = sshll.u32 [#allocation6], 4
          %s164 = int_to_ptr.vmem [resolvable:$true] %s163
          %169 = dma.hbm_to_vmem [thread:$0]  %s162, 9216, %s164, [#allocation7], 64, 64, 4
        $region16: #{tpu_custom_call.1} parent=11 // pred_fallthru
          _
        // Predicated region
        $region17: #{tpu_custom_call.1} parent=11 // pred_check
          %p170 = pneg %p89
        $region18: #{tpu_custom_call.1} parent=11 // pred_check_branch
          %172 = sbr.rel (%p170) target = $region20
        $region19: #{tpu_custom_call.1} parent=11 // pred_region
          _
        $region20: #{tpu_custom_call.1} parent=11 // pred_fallthru
          _
      $region12: #{tpu_custom_call.1} parent=5 // pred_fallthru
        _
      %p173 = scmp.lt.s32.totalorder %s21, 2
      // Predicated region
      $region21: #{tpu_custom_call.1} parent=5 // pred_check
        %p174 = pneg %p173
      $region22: #{tpu_custom_call.1} parent=5 // pred_check_branch
        %176 = sbr.rel (%p174) target = $region24
      $region23: #{tpu_custom_call.1} parent=5 // pred_region
        // Predicated region
        $region25: #{tpu_custom_call.1} parent=23 // pred_check
          %p177 = pneg %p41
        $region26: #{tpu_custom_call.1} parent=23 // pred_check_branch
          %179 = sbr.rel (%p177) target = $region28
        $region27: #{tpu_custom_call.1} parent=23 // pred_region
          %s180 = sand.u32 %s31, 1
          %s181 = scalar_lea.sflag [#allocation4], %s180
          %s182 = sand.u32 %s31, 1
          %s183 = smul.addr %s182, 128
          %s184 = scalar_lea.vmem [#allocation3], %s183
          %186 = vsyncadd %s181, 0
          %s187 = smul.addr %s21, 32
          %s188 = smul.addr %s187, 4
          %s189 = scalar_lea.hbm %s0, %s188
          %s190 = sshll.u32 %s189, 4
          %s191 = int_to_ptr.hbm [resolvable:$true] %s190
          %s192 = sshll.u32 %s184, 4
          %s193 = int_to_ptr.vmem [resolvable:$true] %s192
          %198 = dma.hbm_to_vmem [thread:$0]  %s191, 2048, %s193, %s181, 64, 64, 4
        $region28: #{tpu_custom_call.1} parent=23 // pred_fallthru
          _
      $region24: #{tpu_custom_call.1} parent=5 // pred_fallthru
        _
      %p199 = scmp.le.s32.totalorder 1, %s21
      %p200 = scmp.lt.s32.totalorder %s21, 3
      %p201 = pnand %p199, %p200
      %p202 = pneg %p201
      // Predicated region
      $region29: #{tpu_custom_call.1} parent=5 // pred_check
        _
      $region30: #{tpu_custom_call.1} parent=5 // pred_check_branch
        %204 = sbr.rel (%p201) target = $region32
      $region31: #{tpu_custom_call.1} parent=5 // pred_region
        %s205 = ssub.s32 %s21, 1
        %s206 = sand.u32 %s34, 1
        %s207 = scalar_lea.sflag [#allocation4], %s206
        %s208 = sand.u32 %s34, 1
        %s209 = smul.addr %s208, 128
        %s210 = scalar_lea.vmem [#allocation3], %s209
        // Predicated region
        $region33: #{tpu_custom_call.1} parent=31 // pred_check
          %p211 = pneg %p47
        $region34: #{tpu_custom_call.1} parent=31 // pred_check_branch
          %213 = sbr.rel (%p211) target = $region36
        $region35: #{tpu_custom_call.1} parent=31 // pred_region
          %215 = dma.done %s207, 2048
        $region36: #{tpu_custom_call.1} parent=31 // pred_fallthru
          _
        // Predicated region
        $region37: #{tpu_custom_call.1} parent=31 // pred_check
          %p216 = pneg %p68
        $region38: #{tpu_custom_call.1} parent=31 // pred_check_branch
          %218 = sbr.rel (%p216) target = $region40
        $region39: #{tpu_custom_call.1} parent=31 // pred_region
          %220 = dma.done [#allocation7], 9216
        $region40: #{tpu_custom_call.1} parent=31 // pred_fallthru
          _
        %s221 = sand.u32 %s34, 1
        %s222 = scalar_lea.sflag [#allocation4], %s221
        %s223 = sand.u32 %s34, 1
        %s224 = smul.addr %s223, 128
        %s225 = scalar_lea.vmem [#allocation3], %s224
        %p226 = pneg %p47
        %p227 = pneg %p44
        %p228 = pneg %p68
        %p229 = pneg %p65
        %p230 = pneg %p89
        %p231 = pneg %p86
        %p232 = pneg %p115
        %p233 = pneg %p112
        %s234 = sand.u32 %s102, 1
        %s235 = scalar_lea.sflag [#allocation5], %s234
        %s236 = sand.u32 %s102, 1
        %s237 = smul.addr %s236, 128
        %s238 = scalar_lea.vmem [#allocation8], %s237
        %p239 = pneg %p141
        %p240 = pneg %p138
        %s241 = sand.u32 %s128, 1
        %s242 = scalar_lea.sflag [#allocation10], %s241
        %s243 = sand.u32 %s128, 1
        %s244 = smul.addr %s243, 2
        %s245 = scalar_lea.vmem [#allocation9], %s244
        %v247 = vld [vmem:[%s210] sm:$0xf]
        %v248 = vld [vmem:[%s210 + $0x4] sm:$0xf]
        %v249 = vld [vmem:[%s210 + $0x8] sm:$0xf]
        %v250 = vld [vmem:[%s210 + $0xc] sm:$0xf]
        %v251 = vld [vmem:[%s210 + $0x10] sm:$0xf]
        %v252 = vld [vmem:[%s210 + $0x14] sm:$0xf]
        %v253 = vld [vmem:[%s210 + $0x18] sm:$0xf]
        %v254 = vld [vmem:[%s210 + $0x1c] sm:$0xf]
        %v255 = vld [vmem:[%s210 + $0x20] sm:$0xf]
        %v256 = vld [vmem:[%s210 + $0x24] sm:$0xf]
        %v257 = vld [vmem:[%s210 + $0x28] sm:$0xf]
        %v258 = vld [vmem:[%s210 + $0x2c] sm:$0xf]
        %v259 = vld [vmem:[%s210 + $0x30] sm:$0xf]
        %v260 = vld [vmem:[%s210 + $0x34] sm:$0xf]
        %v261 = vld [vmem:[%s210 + $0x38] sm:$0xf]
        %v262 = vld [vmem:[%s210 + $0x3c] sm:$0xf]
        %v263 = vld [vmem:[%s210 + $0x40] sm:$0xf]
        %v264 = vld [vmem:[%s210 + $0x44] sm:$0xf]
        %v265 = vld [vmem:[%s210 + $0x48] sm:$0xf]
        %v266 = vld [vmem:[%s210 + $0x4c] sm:$0xf]
        %v267 = vld [vmem:[%s210 + $0x50] sm:$0xf]
        %v268 = vld [vmem:[%s210 + $0x54] sm:$0xf]
        %v269 = vld [vmem:[%s210 + $0x58] sm:$0xf]
        %v270 = vld [vmem:[%s210 + $0x5c] sm:$0xf]
        %v271 = vld [vmem:[%s210 + $0x60] sm:$0xf]
        %v272 = vld [vmem:[%s210 + $0x64] sm:$0xf]
        %v273 = vld [vmem:[%s210 + $0x68] sm:$0xf]
        %v274 = vld [vmem:[%s210 + $0x6c] sm:$0xf]
        %v275 = vld [vmem:[%s210 + $0x70] sm:$0xf]
        %v276 = vld [vmem:[%s210 + $0x74] sm:$0xf]
        %v277 = vld [vmem:[%s210 + $0x78] sm:$0xf]
        %v278 = vld [vmem:[%s210 + $0x7c] sm:$0xf]
        %v279 = vunpack.c.l.bf16 %v247
        %v280 = vunpack.c.l.bf16 %v248
        %v281 = vunpack.c.l.bf16 %v249
        %v282 = vunpack.c.l.bf16 %v250
        %v283 = vunpack.c.l.bf16 %v251
        %v284 = vunpack.c.l.bf16 %v252
        %v285 = vunpack.c.l.bf16 %v253
        %v286 = vunpack.c.l.bf16 %v254
        %v287 = vunpack.c.l.bf16 %v255
        %v288 = vunpack.c.l.bf16 %v256
        %v289 = vunpack.c.l.bf16 %v257
        %v290 = vunpack.c.l.bf16 %v258
        %v291 = vunpack.c.l.bf16 %v259
        %v292 = vunpack.c.l.bf16 %v260
        %v293 = vunpack.c.l.bf16 %v261
        %v294 = vunpack.c.l.bf16 %v262
        %v295 = vunpack.c.l.bf16 %v263
        %v296 = vunpack.c.l.bf16 %v264
        %v297 = vunpack.c.l.bf16 %v265
        %v298 = vunpack.c.l.bf16 %v266
        %v299 = vunpack.c.l.bf16 %v267
        %v300 = vunpack.c.l.bf16 %v268
        %v301 = vunpack.c.l.bf16 %v269
        %v302 = vunpack.c.l.bf16 %v270
        %v303 = vunpack.c.l.bf16 %v271
        %v304 = vunpack.c.l.bf16 %v272
        %v305 = vunpack.c.l.bf16 %v273
        %v306 = vunpack.c.l.bf16 %v274
        %v307 = vunpack.c.l.bf16 %v275
        %v308 = vunpack.c.l.bf16 %v276
        %v309 = vunpack.c.l.bf16 %v277
        %v310 = vunpack.c.l.bf16 %v278
        %vm343 = vcmask 1040384
        %v344 = vrot.slane %v279, 7
        %v345 = vrot.slane %v280, 7
        %v346 = vsel %vm343, %v344, %v345
        %v347 = vrot.slane %v281, 7
        %v348 = vrot.slane %v282, 7
        %v349 = vsel %vm343, %v347, %v348
        %v350 = vrot.slane %v283, 7
        %v351 = vrot.slane %v284, 7
        %v352 = vsel %vm343, %v350, %v351
        %v353 = vrot.slane %v285, 7
        %v354 = vrot.slane %v286, 7
        %v355 = vsel %vm343, %v353, %v354
        %v356 = vrot.slane %v287, 7
        %v357 = vrot.slane %v288, 7
        %v358 = vsel %vm343, %v356, %v357
        %v359 = vrot.slane %v289, 7
        %v360 = vrot.slane %v290, 7
        %v361 = vsel %vm343, %v359, %v360
        %v362 = vrot.slane %v291, 7
        %v363 = vrot.slane %v292, 7
        %v364 = vsel %vm343, %v362, %v363
        %v365 = vrot.slane %v293, 7
        %v366 = vrot.slane %v294, 7
        %v367 = vsel %vm343, %v365, %v366
        %v368 = vrot.slane %v295, 7
        %v369 = vrot.slane %v296, 7
        %v370 = vsel %vm343, %v368, %v369
        %v371 = vrot.slane %v297, 7
        %v372 = vrot.slane %v298, 7
        %v373 = vsel %vm343, %v371, %v372
        %v374 = vrot.slane %v299, 7
        %v375 = vrot.slane %v300, 7
        %v376 = vsel %vm343, %v374, %v375
        %v377 = vrot.slane %v301, 7
        %v378 = vrot.slane %v302, 7
        %v379 = vsel %vm343, %v377, %v378
        %v380 = vrot.slane %v303, 7
        %v381 = vrot.slane %v304, 7
        %v382 = vsel %vm343, %v380, %v381
        %v383 = vrot.slane %v305, 7
        %v384 = vrot.slane %v306, 7
        %v385 = vsel %vm343, %v383, %v384
        %v386 = vrot.slane %v307, 7
        %v387 = vrot.slane %v308, 7
        %v388 = vsel %vm343, %v386, %v387
        %v389 = vrot.slane %v309, 7
        %v390 = vrot.slane %v310, 7
        %v391 = vsel %vm343, %v389, %v390
        %v424 = vsel %vm343, 0.0, %v344
        %v425 = vsel %vm343, 0.0, %v347
        %v426 = vsel %vm343, 0.0, %v350
        %v427 = vsel %vm343, 0.0, %v353
        %v428 = vsel %vm343, 0.0, %v356
        %v429 = vsel %vm343, 0.0, %v359
        %v430 = vsel %vm343, 0.0, %v362
        %v431 = vsel %vm343, 0.0, %v365
        %v432 = vsel %vm343, 0.0, %v368
        %v433 = vsel %vm343, 0.0, %v371
        %v434 = vsel %vm343, 0.0, %v374
        %v435 = vsel %vm343, 0.0, %v377
        %v436 = vsel %vm343, 0.0, %v380
        %v437 = vsel %vm343, 0.0, %v383
        %v438 = vsel %vm343, 0.0, %v386
        %v439 = vsel %vm343, 0.0, %v389
        %vm440 = vcmask 1046528
        %v441 = vrot.slane %v279, 1
        %v442 = vrot.slane %v280, 1
        %v443 = vsel %vm440, %v441, %v442
        %v444 = vrot.slane %v281, 1
        %v445 = vrot.slane %v282, 1
        %v446 = vsel %vm440, %v444, %v445
        %v447 = vrot.slane %v283, 1
        %v448 = vrot.slane %v284, 1
        %v449 = vsel %vm440, %v447, %v448
        %v450 = vrot.slane %v285, 1
        %v451 = vrot.slane %v286, 1
        %v452 = vsel %vm440, %v450, %v451
        %v453 = vrot.slane %v287, 1
        %v454 = vrot.slane %v288, 1
        %v455 = vsel %vm440, %v453, %v454
        %v456 = vrot.slane %v289, 1
        %v457 = vrot.slane %v290, 1
        %v458 = vsel %vm440, %v456, %v457
        %v459 = vrot.slane %v291, 1
        %v460 = vrot.slane %v292, 1
        %v461 = vsel %vm440, %v459, %v460
        %v462 = vrot.slane %v293, 1
        %v463 = vrot.slane %v294, 1
        %v464 = vsel %vm440, %v462, %v463
        %v465 = vrot.slane %v295, 1
        %v466 = vrot.slane %v296, 1
        %v467 = vsel %vm440, %v465, %v466
        %v468 = vrot.slane %v297, 1
        %v469 = vrot.slane %v298, 1
        %v470 = vsel %vm440, %v468, %v469
        %v471 = vrot.slane %v299, 1
        %v472 = vrot.slane %v300, 1
        %v473 = vsel %vm440, %v471, %v472
        %v474 = vrot.slane %v301, 1
        %v475 = vrot.slane %v302, 1
        %v476 = vsel %vm440, %v474, %v475
        %v477 = vrot.slane %v303, 1
        %v478 = vrot.slane %v304, 1
        %v479 = vsel %vm440, %v477, %v478
        %v480 = vrot.slane %v305, 1
        %v481 = vrot.slane %v306, 1
        %v482 = vsel %vm440, %v480, %v481
        %v483 = vrot.slane %v307, 1
        %v484 = vrot.slane %v308, 1
        %v485 = vsel %vm440, %v483, %v484
        %v486 = vrot.slane %v309, 1
        %v487 = vrot.slane %v310, 1
        %v488 = vsel %vm440, %v486, %v487
        %v521 = vsel %vm440, %v442, 0.0
        %v522 = vsel %vm440, %v445, 0.0
        %v523 = vsel %vm440, %v448, 0.0
        %v524 = vsel %vm440, %v451, 0.0
        %v525 = vsel %vm440, %v454, 0.0
        %v526 = vsel %vm440, %v457, 0.0
        %v527 = vsel %vm440, %v460, 0.0
        %v528 = vsel %vm440, %v463, 0.0
        %v529 = vsel %vm440, %v466, 0.0
        %v530 = vsel %vm440, %v469, 0.0
        %v531 = vsel %vm440, %v472, 0.0
        %v532 = vsel %vm440, %v475, 0.0
        %v533 = vsel %vm440, %v478, 0.0
        %v534 = vsel %vm440, %v481, 0.0
        %v535 = vsel %vm440, %v484, 0.0
        %v536 = vsel %vm440, %v487, 0.0
        %537 = vst [vmem:[#allocation2] sm:$0xff] 0
        %538 = vst [vmem:[#allocation2 + $0x8] sm:$0xf] 0
        %539 = vst [vmem:[#allocation2 + $0xc] sm:$0xff] 0
        %540 = vst [vmem:[#allocation2 + $0x14] sm:$0xf] 0
        %s541 = scalar_lea.vmem [#allocation2], 408
        %542 = vst [vmem:[%s541] sm:$0xff] 0
        %543 = vst [vmem:[%s541 + $0x8] sm:$0xf] 0
        %544 = vst [vmem:[%s541 + $0xc] sm:$0xff] 0
        %545 = vst [vmem:[%s541 + $0x14] sm:$0xf] 0
        %v546 = vpack.c.bf16 %v424, %v424
        %v547 = vpack.c.bf16 %v346, %v346
        %v548 = vpack.c.bf16 %v425, %v425
        %v549 = vpack.c.bf16 %v349, %v349
        %v550 = vpack.c.bf16 %v426, %v426
        %v551 = vpack.c.bf16 %v352, %v352
        %v552 = vpack.c.bf16 %v427, %v427
        %v553 = vpack.c.bf16 %v355, %v355
        %v554 = vpack.c.bf16 %v428, %v428
        %v555 = vpack.c.bf16 %v358, %v358
        %v556 = vpack.c.bf16 %v429, %v429
        %v557 = vpack.c.bf16 %v361, %v361
        %v558 = vpack.c.bf16 %v430, %v430
        %v559 = vpack.c.bf16 %v364, %v364
        %v560 = vpack.c.bf16 %v431, %v431
        %v561 = vpack.c.bf16 %v367, %v367
        %v562 = vpack.c.bf16 %v432, %v432
        %v563 = vpack.c.bf16 %v370, %v370
        %v564 = vpack.c.bf16 %v433, %v433
        %v565 = vpack.c.bf16 %v373, %v373
        %v566 = vpack.c.bf16 %v434, %v434
        %v567 = vpack.c.bf16 %v376, %v376
        %v568 = vpack.c.bf16 %v435, %v435
        %v569 = vpack.c.bf16 %v379, %v379
        %v570 = vpack.c.bf16 %v436, %v436
        %v571 = vpack.c.bf16 %v382, %v382
        %v572 = vpack.c.bf16 %v437, %v437
        %v573 = vpack.c.bf16 %v385, %v385
        %v574 = vpack.c.bf16 %v438, %v438
        %v575 = vpack.c.bf16 %v388, %v388
        %v576 = vpack.c.bf16 %v439, %v439
        %v577 = vpack.c.bf16 %v391, %v391
        %s578 = scalar_lea.vmem [#allocation2], 24
        %579 = vst [vmem:[%s578] sm:$0xf] %v546
        %580 = vst [vmem:[%s578 + $0xc] sm:$0xf] %v547
        %581 = vst [vmem:[%s578 + $0x18] sm:$0xf] %v548
        %582 = vst [vmem:[%s578 + $0x24] sm:$0xf] %v549
        %583 = vst [vmem:[%s578 + $0x30] sm:$0xf] %v550
        %584 = vst [vmem:[%s578 + $0x3c] sm:$0xf] %v551
        %585 = vst [vmem:[%s578 + $0x48] sm:$0xf] %v552
        %586 = vst [vmem:[%s578 + $0x54] sm:$0xf] %v553
        %587 = vst [vmem:[%s578 + $0x60] sm:$0xf] %v554
        %588 = vst [vmem:[%s578 + $0x6c] sm:$0xf] %v555
        %589 = vst [vmem:[%s578 + $0x78] sm:$0xf] %v556
        %590 = vst [vmem:[%s578 + $0x84] sm:$0xf] %v557
        %591 = vst [vmem:[%s578 + $0x90] sm:$0xf] %v558
        %592 = vst [vmem:[%s578 + $0x9c] sm:$0xf] %v559
        %593 = vst [vmem:[%s578 + $0xa8] sm:$0xf] %v560
        %594 = vst [vmem:[%s578 + $0xb4] sm:$0xf] %v561
        %595 = vst [vmem:[%s578 + $0xc0] sm:$0xf] %v562
        %596 = vst [vmem:[%s578 + $0xcc] sm:$0xf] %v563
        %597 = vst [vmem:[%s578 + $0xd8] sm:$0xf] %v564
        %598 = vst [vmem:[%s578 + $0xe4] sm:$0xf] %v565
        %599 = vst [vmem:[%s578 + $0xf0] sm:$0xf] %v566
        %600 = vst [vmem:[%s578 + $0xfc] sm:$0xf] %v567
        %601 = vst [vmem:[%s578 + $0x108] sm:$0xf] %v568
        %602 = vst [vmem:[%s578 + $0x114] sm:$0xf] %v569
        %603 = vst [vmem:[%s578 + $0x120] sm:$0xf] %v570
        %604 = vst [vmem:[%s578 + $0x12c] sm:$0xf] %v571
        %605 = vst [vmem:[%s578 + $0x138] sm:$0xf] %v572
        %606 = vst [vmem:[%s578 + $0x144] sm:$0xf] %v573
        %607 = vst [vmem:[%s578 + $0x150] sm:$0xf] %v574
        %608 = vst [vmem:[%s578 + $0x15c] sm:$0xf] %v575
        %609 = vst [vmem:[%s578 + $0x168] sm:$0xf] %v576
        %610 = vst [vmem:[%s578 + $0x174] sm:$0xf] %v577
        %611 = vst [vmem:[%s578 + $0x4] sm:$0xf] %v247
        %612 = vst [vmem:[%s578 + $0x10] sm:$0xf] %v248
        %613 = vst [vmem:[%s578 + $0x1c] sm:$0xf] %v249
        %614 = vst [vmem:[%s578 + $0x28] sm:$0xf] %v250
        %615 = vst [vmem:[%s578 + $0x34] sm:$0xf] %v251
        %616 = vst [vmem:[%s578 + $0x40] sm:$0xf] %v252
        %617 = vst [vmem:[%s578 + $0x4c] sm:$0xf] %v253
        %618 = vst [vmem:[%s578 + $0x58] sm:$0xf] %v254
        %619 = vst [vmem:[%s578 + $0x64] sm:$0xf] %v255
        %620 = vst [vmem:[%s578 + $0x70] sm:$0xf] %v256
        %621 = vst [vmem:[%s578 + $0x7c] sm:$0xf] %v257
        %622 = vst [vmem:[%s578 + $0x88] sm:$0xf] %v258
        %623 = vst [vmem:[%s578 + $0x94] sm:$0xf] %v259
        %624 = vst [vmem:[%s578 + $0xa0] sm:$0xf] %v260
        %625 = vst [vmem:[%s578 + $0xac] sm:$0xf] %v261
        %626 = vst [vmem:[%s578 + $0xb8] sm:$0xf] %v262
        %627 = vst [vmem:[%s578 + $0xc4] sm:$0xf] %v263
        %628 = vst [vmem:[%s578 + $0xd0] sm:$0xf] %v264
        %629 = vst [vmem:[%s578 + $0xdc] sm:$0xf] %v265
        %630 = vst [vmem:[%s578 + $0xe8] sm:$0xf] %v266
        %631 = vst [vmem:[%s578 + $0xf4] sm:$0xf] %v267
        %632 = vst [vmem:[%s578 + $0x100] sm:$0xf] %v268
        %633 = vst [vmem:[%s578 + $0x10c] sm:$0xf] %v269
        %634 = vst [vmem:[%s578 + $0x118] sm:$0xf] %v270
        %635 = vst [vmem:[%s578 + $0x124] sm:$0xf] %v271
        %636 = vst [vmem:[%s578 + $0x130] sm:$0xf] %v272
        %637 = vst [vmem:[%s578 + $0x13c] sm:$0xf] %v273
        %638 = vst [vmem:[%s578 + $0x148] sm:$0xf] %v274
        %639 = vst [vmem:[%s578 + $0x154] sm:$0xf] %v275
        %640 = vst [vmem:[%s578 + $0x160] sm:$0xf] %v276
        %641 = vst [vmem:[%s578 + $0x16c] sm:$0xf] %v277
        %642 = vst [vmem:[%s578 + $0x178] sm:$0xf] %v278
        %v643 = vpack.c.bf16 %v443, %v443
        %v644 = vpack.c.bf16 %v521, %v521
        %v645 = vpack.c.bf16 %v446, %v446
        %v646 = vpack.c.bf16 %v522, %v522
        %v647 = vpack.c.bf16 %v449, %v449
        %v648 = vpack.c.bf16 %v523, %v523
        %v649 = vpack.c.bf16 %v452, %v452
        %v650 = vpack.c.bf16 %v524, %v524
        %v651 = vpack.c.bf16 %v455, %v455
        %v652 = vpack.c.bf16 %v525, %v525
        %v653 = vpack.c.bf16 %v458, %v458
        %v654 = vpack.c.bf16 %v526, %v526
        %v655 = vpack.c.bf16 %v461, %v461
        %v656 = vpack.c.bf16 %v527, %v527
        %v657 = vpack.c.bf16 %v464, %v464
        %v658 = vpack.c.bf16 %v528, %v528
        %v659 = vpack.c.bf16 %v467, %v467
        %v660 = vpack.c.bf16 %v529, %v529
        %v661 = vpack.c.bf16 %v470, %v470
        %v662 = vpack.c.bf16 %v530, %v530
        %v663 = vpack.c.bf16 %v473, %v473
        %v664 = vpack.c.bf16 %v531, %v531
        %v665 = vpack.c.bf16 %v476, %v476
        %v666 = vpack.c.bf16 %v532, %v532
        %v667 = vpack.c.bf16 %v479, %v479
        %v668 = vpack.c.bf16 %v533, %v533
        %v669 = vpack.c.bf16 %v482, %v482
        %v670 = vpack.c.bf16 %v534, %v534
        %v671 = vpack.c.bf16 %v485, %v485
        %v672 = vpack.c.bf16 %v535, %v535
        %v673 = vpack.c.bf16 %v488, %v488
        %v674 = vpack.c.bf16 %v536, %v536
        %675 = vst [vmem:[%s578 + $0x8] sm:$0xf] %v643
        %676 = vst [vmem:[%s578 + $0x14] sm:$0xf] %v644
        %677 = vst [vmem:[%s578 + $0x20] sm:$0xf] %v645
        %678 = vst [vmem:[%s578 + $0x2c] sm:$0xf] %v646
        %679 = vst [vmem:[%s578 + $0x38] sm:$0xf] %v647
        %680 = vst [vmem:[%s578 + $0x44] sm:$0xf] %v648
        %681 = vst [vmem:[%s578 + $0x50] sm:$0xf] %v649
        %682 = vst [vmem:[%s578 + $0x5c] sm:$0xf] %v650
        %683 = vst [vmem:[%s578 + $0x68] sm:$0xf] %v651
        %684 = vst [vmem:[%s578 + $0x74] sm:$0xf] %v652
        %685 = vst [vmem:[%s578 + $0x80] sm:$0xf] %v653
        %686 = vst [vmem:[%s578 + $0x8c] sm:$0xf] %v654
        %687 = vst [vmem:[%s578 + $0x98] sm:$0xf] %v655
        %688 = vst [vmem:[%s578 + $0xa4] sm:$0xf] %v656
        %689 = vst [vmem:[%s578 + $0xb0] sm:$0xf] %v657
        %690 = vst [vmem:[%s578 + $0xbc] sm:$0xf] %v658
        %691 = vst [vmem:[%s578 + $0xc8] sm:$0xf] %v659
        %692 = vst [vmem:[%s578 + $0xd4] sm:$0xf] %v660
        %693 = vst [vmem:[%s578 + $0xe0] sm:$0xf] %v661
        %694 = vst [vmem:[%s578 + $0xec] sm:$0xf] %v662
        %695 = vst [vmem:[%s578 + $0xf8] sm:$0xf] %v663
        %696 = vst [vmem:[%s578 + $0x104] sm:$0xf] %v664
        %697 = vst [vmem:[%s578 + $0x110] sm:$0xf] %v665
        %698 = vst [vmem:[%s578 + $0x11c] sm:$0xf] %v666
        %699 = vst [vmem:[%s578 + $0x128] sm:$0xf] %v667
        %700 = vst [vmem:[%s578 + $0x134] sm:$0xf] %v668
        %701 = vst [vmem:[%s578 + $0x140] sm:$0xf] %v669
        %702 = vst [vmem:[%s578 + $0x14c] sm:$0xf] %v670
        %703 = vst [vmem:[%s578 + $0x158] sm:$0xf] %v671
        %704 = vst [vmem:[%s578 + $0x164] sm:$0xf] %v672
        %705 = vst [vmem:[%s578 + $0x170] sm:$0xf] %v673
        %706 = vst [vmem:[%s578 + $0x17c] sm:$0xf] %v674
        %v707 = vld [vmem:[#allocation2] sm:$0xff]
        %v708 = vld [vmem:[#allocation2 + $0x8] sm:$0xf]
        %v709 = vld [vmem:[#allocation2 + $0xc] sm:$0xff]
        %v710 = vld [vmem:[#allocation2 + $0x14] sm:$0xf]
        %v711 = vld [vmem:[#allocation2 + $0x18] sm:$0xff]
        %v712 = vld [vmem:[#allocation2 + $0x20] sm:$0xf]
        %v713 = vld [vmem:[#allocation2 + $0x24] sm:$0xff]
        %v714 = vld [vmem:[#allocation2 + $0x2c] sm:$0xf]
        %v715 = vld [vmem:[#allocation2 + $0x30] sm:$0xff]
        %v716 = vld [vmem:[#allocation2 + $0x38] sm:$0xf]
        %v717 = vld [vmem:[#allocation2 + $0x3c] sm:$0xff]
        %v718 = vld [vmem:[#allocation2 + $0x44] sm:$0xf]
        %v719 = vld [vmem:[#allocation2 + $0x48] sm:$0xff]
        %v720 = vld [vmem:[#allocation2 + $0x50] sm:$0xf]
        %v721 = vld [vmem:[#allocation2 + $0x54] sm:$0xff]
        %v722 = vld [vmem:[#allocation2 + $0x5c] sm:$0xf]
        %v723 = vld [vmem:[#allocation2 + $0x60] sm:$0xff]
        %v724 = vld [vmem:[#allocation2 + $0x68] sm:$0xf]
        %v725 = vld [vmem:[#allocation2 + $0x6c] sm:$0xff]
        %v726 = vld [vmem:[#allocation2 + $0x74] sm:$0xf]
        %v727 = vld [vmem:[#allocation2 + $0x78] sm:$0xff]
        %v728 = vld [vmem:[#allocation2 + $0x80] sm:$0xf]
        %v729 = vld [vmem:[#allocation2 + $0x84] sm:$0xff]
        %v730 = vld [vmem:[#allocation2 + $0x8c] sm:$0xf]
        %v731 = vld [vmem:[#allocation2 + $0x90] sm:$0xff]
        %v732 = vld [vmem:[#allocation2 + $0x98] sm:$0xf]
        %v733 = vld [vmem:[#allocation2 + $0x9c] sm:$0xff]
        %v734 = vld [vmem:[#allocation2 + $0xa4] sm:$0xf]
        %v735 = vld [vmem:[#allocation2 + $0xa8] sm:$0xff]
        %v736 = vld [vmem:[#allocation2 + $0xb0] sm:$0xf]
        %v737 = vld [vmem:[#allocation2 + $0xb4] sm:$0xff]
        %v738 = vld [vmem:[#allocation2 + $0xbc] sm:$0xf]
        %v739 = vld [vmem:[#allocation2 + $0xc0] sm:$0xff]
        %v740 = vld [vmem:[#allocation2 + $0xc8] sm:$0xf]
        %v741 = vld [vmem:[#allocation2 + $0xcc] sm:$0xff]
        %v742 = vld [vmem:[#allocation2 + $0xd4] sm:$0xf]
        %v743 = vld [vmem:[#allocation2 + $0xd8] sm:$0xff]
        %v744 = vld [vmem:[#allocation2 + $0xe0] sm:$0xf]
        %v745 = vld [vmem:[#allocation2 + $0xe4] sm:$0xff]
        %v746 = vld [vmem:[#allocation2 + $0xec] sm:$0xf]
        %v747 = vld [vmem:[#allocation2 + $0xf0] sm:$0xff]
        %v748 = vld [vmem:[#allocation2 + $0xf8] sm:$0xf]
        %v749 = vld [vmem:[#allocation2 + $0xfc] sm:$0xff]
        %v750 = vld [vmem:[#allocation2 + $0x104] sm:$0xf]
        %v751 = vld [vmem:[#allocation2 + $0x108] sm:$0xff]
        %v752 = vld [vmem:[#allocation2 + $0x110] sm:$0xf]
        %v753 = vld [vmem:[#allocation2 + $0x114] sm:$0xff]
        %v754 = vld [vmem:[#allocation2 + $0x11c] sm:$0xf]
        %v755 = vld [vmem:[#allocation2 + $0x120] sm:$0xff]
        %v756 = vld [vmem:[#allocation2 + $0x128] sm:$0xf]
        %v757 = vld [vmem:[#allocation2 + $0x12c] sm:$0xff]
        %v758 = vld [vmem:[#allocation2 + $0x134] sm:$0xf]
        %v759 = vld [vmem:[#allocation2 + $0x138] sm:$0xff]
        %v760 = vld [vmem:[#allocation2 + $0x140] sm:$0xf]
        %v761 = vld [vmem:[#allocation2 + $0x144] sm:$0xff]
        %v762 = vld [vmem:[#allocation2 + $0x14c] sm:$0xf]
        %v763 = vld [vmem:[#allocation2 + $0x150] sm:$0xff]
        %v764 = vld [vmem:[#allocation2 + $0x158] sm:$0xf]
        %v765 = vld [vmem:[#allocation2 + $0x15c] sm:$0xff]
        %v766 = vld [vmem:[#allocation2 + $0x164] sm:$0xf]
        %v767 = vld [vmem:[#allocation2 + $0x168] sm:$0xff]
        %v768 = vld [vmem:[#allocation2 + $0x170] sm:$0xf]
        %v769 = vld [vmem:[#allocation2 + $0x174] sm:$0xff]
        %v770 = vld [vmem:[#allocation2 + $0x17c] sm:$0xf]
        %v771 = vld [vmem:[#allocation6] sm:$0xf]
        %v772 = vld [vmem:[#allocation6 + $0x4] sm:$0xf]
        %v773 = vld [vmem:[#allocation6 + $0x8] sm:$0xf]
        %v774 = vld [vmem:[#allocation6 + $0xc] sm:$0xf]
        %v775 = vld [vmem:[#allocation6 + $0x10] sm:$0xf]
        %v776 = vld [vmem:[#allocation6 + $0x14] sm:$0xf]
        %v777 = vld [vmem:[#allocation6 + $0x18] sm:$0xf]
        %v778 = vld [vmem:[#allocation6 + $0x1c] sm:$0xf]
        %v779 = vld [vmem:[#allocation6 + $0x20] sm:$0xf]
        %v780 = vld [vmem:[#allocation6 + $0x24] sm:$0xf]
        %v781 = vld [vmem:[#allocation6 + $0x28] sm:$0xf]
        %v782 = vld [vmem:[#allocation6 + $0x2c] sm:$0xf]
        %v783 = vld [vmem:[#allocation6 + $0x30] sm:$0xf]
        %v784 = vld [vmem:[#allocation6 + $0x34] sm:$0xf]
        %v785 = vld [vmem:[#allocation6 + $0x38] sm:$0xf]
        %v786 = vld [vmem:[#allocation6 + $0x3c] sm:$0xf]
        %v787 = vld [vmem:[#allocation6 + $0x40] sm:$0xf]
        %v788 = vld [vmem:[#allocation6 + $0x44] sm:$0xf]
        %v789 = vld [vmem:[#allocation6 + $0x48] sm:$0xf]
        %v790 = vld [vmem:[#allocation6 + $0x4c] sm:$0xf]
        %v791 = vld [vmem:[#allocation6 + $0x50] sm:$0xf]
        %v792 = vld [vmem:[#allocation6 + $0x54] sm:$0xf]
        %v793 = vld [vmem:[#allocation6 + $0x58] sm:$0xf]
        %v794 = vld [vmem:[#allocation6 + $0x5c] sm:$0xf]
        %v795 = vld [vmem:[#allocation6 + $0x60] sm:$0xf]
        %v796 = vld [vmem:[#allocation6 + $0x64] sm:$0xf]
        %v797 = vld [vmem:[#allocation6 + $0x68] sm:$0xf]
        %v798 = vld [vmem:[#allocation6 + $0x6c] sm:$0xf]
        %v799 = vld [vmem:[#allocation6 + $0x70] sm:$0xf]
        %v800 = vld [vmem:[#allocation6 + $0x74] sm:$0xf]
        %v801 = vld [vmem:[#allocation6 + $0x78] sm:$0xf]
        %v802 = vld [vmem:[#allocation6 + $0x7c] sm:$0xf]
        %v803 = vld [vmem:[#allocation6 + $0x80] sm:$0xf]
        %v804 = vld [vmem:[#allocation6 + $0x84] sm:$0xf]
        %v805 = vld [vmem:[#allocation6 + $0x88] sm:$0xf]
        %v806 = vld [vmem:[#allocation6 + $0x8c] sm:$0xf]
        %v807 = vld [vmem:[#allocation6 + $0x90] sm:$0xf]
        %v808 = vld [vmem:[#allocation6 + $0x94] sm:$0xf]
        %v809 = vld [vmem:[#allocation6 + $0x98] sm:$0xf]
        %v810 = vld [vmem:[#allocation6 + $0x9c] sm:$0xf]
        %v811 = vld [vmem:[#allocation6 + $0xa0] sm:$0xf]
        %v812 = vld [vmem:[#allocation6 + $0xa4] sm:$0xf]
        %v813 = vld [vmem:[#allocation6 + $0xa8] sm:$0xf]
        %v814 = vld [vmem:[#allocation6 + $0xac] sm:$0xf]
        %v815 = vld [vmem:[#allocation6 + $0xb0] sm:$0xf]
        %v816 = vld [vmem:[#allocation6 + $0xb4] sm:$0xf]
        %v817 = vld [vmem:[#allocation6 + $0xb8] sm:$0xf]
        %v818 = vld [vmem:[#allocation6 + $0xbc] sm:$0xf]
        %v819 = vld [vmem:[%s578] sm:$0xff]
        %v820 = vld [vmem:[%s578 + $0x8] sm:$0xf]
        %v821 = vld [vmem:[%s578 + $0xc] sm:$0xff]
        %v822 = vld [vmem:[%s578 + $0x14] sm:$0xf]
        %v823 = vld [vmem:[%s578 + $0x18] sm:$0xff]
        %v824 = vld [vmem:[%s578 + $0x20] sm:$0xf]
        %v825 = vld [vmem:[%s578 + $0x24] sm:$0xff]
        %v826 = vld [vmem:[%s578 + $0x2c] sm:$0xf]
        %v827 = vld [vmem:[%s578 + $0x30] sm:$0xff]
        %v828 = vld [vmem:[%s578 + $0x38] sm:$0xf]
        %v829 = vld [vmem:[%s578 + $0x3c] sm:$0xff]
        %v830 = vld [vmem:[%s578 + $0x44] sm:$0xf]
        %v831 = vld [vmem:[%s578 + $0x48] sm:$0xff]
        %v832 = vld [vmem:[%s578 + $0x50] sm:$0xf]
        %v833 = vld [vmem:[%s578 + $0x54] sm:$0xff]
        %v834 = vld [vmem:[%s578 + $0x5c] sm:$0xf]
        %v835 = vld [vmem:[%s578 + $0x60] sm:$0xff]
        %v836 = vld [vmem:[%s578 + $0x68] sm:$0xf]
        %v837 = vld [vmem:[%s578 + $0x6c] sm:$0xff]
        %v838 = vld [vmem:[%s578 + $0x74] sm:$0xf]
        %v839 = vld [vmem:[%s578 + $0x78] sm:$0xff]
        %v840 = vld [vmem:[%s578 + $0x80] sm:$0xf]
        %v841 = vld [vmem:[%s578 + $0x84] sm:$0xff]
        %v842 = vld [vmem:[%s578 + $0x8c] sm:$0xf]
        %v843 = vld [vmem:[%s578 + $0x90] sm:$0xff]
        %v844 = vld [vmem:[%s578 + $0x98] sm:$0xf]
        %v845 = vld [vmem:[%s578 + $0x9c] sm:$0xff]
        %v846 = vld [vmem:[%s578 + $0xa4] sm:$0xf]
        %v847 = vld [vmem:[%s578 + $0xa8] sm:$0xff]
        %v848 = vld [vmem:[%s578 + $0xb0] sm:$0xf]
        %v849 = vld [vmem:[%s578 + $0xb4] sm:$0xff]
        %v850 = vld [vmem:[%s578 + $0xbc] sm:$0xf]
        %v851 = vld [vmem:[%s578 + $0xc0] sm:$0xff]
        %v852 = vld [vmem:[%s578 + $0xc8] sm:$0xf]
        %v853 = vld [vmem:[%s578 + $0xcc] sm:$0xff]
        %v854 = vld [vmem:[%s578 + $0xd4] sm:$0xf]
        %v855 = vld [vmem:[%s578 + $0xd8] sm:$0xff]
        %v856 = vld [vmem:[%s578 + $0xe0] sm:$0xf]
        %v857 = vld [vmem:[%s578 + $0xe4] sm:$0xff]
        %v858 = vld [vmem:[%s578 + $0xec] sm:$0xf]
        %v859 = vld [vmem:[%s578 + $0xf0] sm:$0xff]
        %v860 = vld [vmem:[%s578 + $0xf8] sm:$0xf]
        %v861 = vld [vmem:[%s578 + $0xfc] sm:$0xff]
        %v862 = vld [vmem:[%s578 + $0x104] sm:$0xf]
        %v863 = vld [vmem:[%s578 + $0x108] sm:$0xff]
        %v864 = vld [vmem:[%s578 + $0x110] sm:$0xf]
        %v865 = vld [vmem:[%s578 + $0x114] sm:$0xff]
        %v866 = vld [vmem:[%s578 + $0x11c] sm:$0xf]
        %v867 = vld [vmem:[%s578 + $0x120] sm:$0xff]
        %v868 = vld [vmem:[%s578 + $0x128] sm:$0xf]
        %v869 = vld [vmem:[%s578 + $0x12c] sm:$0xff]
        %v870 = vld [vmem:[%s578 + $0x134] sm:$0xf]
        %v871 = vld [vmem:[%s578 + $0x138] sm:$0xff]
        %v872 = vld [vmem:[%s578 + $0x140] sm:$0xf]
        %v873 = vld [vmem:[%s578 + $0x144] sm:$0xff]
        %v874 = vld [vmem:[%s578 + $0x14c] sm:$0xf]
        %v875 = vld [vmem:[%s578 + $0x150] sm:$0xff]
        %v876 = vld [vmem:[%s578 + $0x158] sm:$0xf]
        %v877 = vld [vmem:[%s578 + $0x15c] sm:$0xff]
        %v878 = vld [vmem:[%s578 + $0x164] sm:$0xf]
        %v879 = vld [vmem:[%s578 + $0x168] sm:$0xff]
        %v880 = vld [vmem:[%s578 + $0x170] sm:$0xf]
        %v881 = vld [vmem:[%s578 + $0x174] sm:$0xff]
        %v882 = vld [vmem:[%s578 + $0x17c] sm:$0xf]
        %s883 = scalar_lea.vmem [#allocation6], 192
        %v884 = vld [vmem:[%s883] sm:$0xf]
        %v885 = vld [vmem:[%s883 + $0x4] sm:$0xf]
        %v886 = vld [vmem:[%s883 + $0x8] sm:$0xf]
        %v887 = vld [vmem:[%s883 + $0xc] sm:$0xf]
        %v888 = vld [vmem:[%s883 + $0x10] sm:$0xf]
        %v889 = vld [vmem:[%s883 + $0x14] sm:$0xf]
        %v890 = vld [vmem:[%s883 + $0x18] sm:$0xf]
        %v891 = vld [vmem:[%s883 + $0x1c] sm:$0xf]
        %v892 = vld [vmem:[%s883 + $0x20] sm:$0xf]
        %v893 = vld [vmem:[%s883 + $0x24] sm:$0xf]
        %v894 = vld [vmem:[%s883 + $0x28] sm:$0xf]
        %v895 = vld [vmem:[%s883 + $0x2c] sm:$0xf]
        %v896 = vld [vmem:[%s883 + $0x30] sm:$0xf]
        %v897 = vld [vmem:[%s883 + $0x34] sm:$0xf]
        %v898 = vld [vmem:[%s883 + $0x38] sm:$0xf]
        %v899 = vld [vmem:[%s883 + $0x3c] sm:$0xf]
        %v900 = vld [vmem:[%s883 + $0x40] sm:$0xf]
        %v901 = vld [vmem:[%s883 + $0x44] sm:$0xf]
        %v902 = vld [vmem:[%s883 + $0x48] sm:$0xf]
        %v903 = vld [vmem:[%s883 + $0x4c] sm:$0xf]
        %v904 = vld [vmem:[%s883 + $0x50] sm:$0xf]
        %v905 = vld [vmem:[%s883 + $0x54] sm:$0xf]
        %v906 = vld [vmem:[%s883 + $0x58] sm:$0xf]
        %v907 = vld [vmem:[%s883 + $0x5c] sm:$0xf]
        %v908 = vld [vmem:[%s883 + $0x60] sm:$0xf]
        %v909 = vld [vmem:[%s883 + $0x64] sm:$0xf]
        %v910 = vld [vmem:[%s883 + $0x68] sm:$0xf]
        %v911 = vld [vmem:[%s883 + $0x6c] sm:$0xf]
        %v912 = vld [vmem:[%s883 + $0x70] sm:$0xf]
        %v913 = vld [vmem:[%s883 + $0x74] sm:$0xf]
        %v914 = vld [vmem:[%s883 + $0x78] sm:$0xf]
        %v915 = vld [vmem:[%s883 + $0x7c] sm:$0xf]
        %v916 = vld [vmem:[%s883 + $0x80] sm:$0xf]
        %v917 = vld [vmem:[%s883 + $0x84] sm:$0xf]
        %v918 = vld [vmem:[%s883 + $0x88] sm:$0xf]
        %v919 = vld [vmem:[%s883 + $0x8c] sm:$0xf]
        %v920 = vld [vmem:[%s883 + $0x90] sm:$0xf]
        %v921 = vld [vmem:[%s883 + $0x94] sm:$0xf]
        %v922 = vld [vmem:[%s883 + $0x98] sm:$0xf]
        %v923 = vld [vmem:[%s883 + $0x9c] sm:$0xf]
        %v924 = vld [vmem:[%s883 + $0xa0] sm:$0xf]
        %v925 = vld [vmem:[%s883 + $0xa4] sm:$0xf]
        %v926 = vld [vmem:[%s883 + $0xa8] sm:$0xf]
        %v927 = vld [vmem:[%s883 + $0xac] sm:$0xf]
        %v928 = vld [vmem:[%s883 + $0xb0] sm:$0xf]
        %v929 = vld [vmem:[%s883 + $0xb4] sm:$0xf]
        %v930 = vld [vmem:[%s883 + $0xb8] sm:$0xf]
        %v931 = vld [vmem:[%s883 + $0xbc] sm:$0xf]
        %v996 = vunpack.c.l.b16 %v819
        %v997 = vunpack.c.h.b16 %v819
        %v998 = vunpack.c.l.b16 %v820
        %v999 = vunpack.c.l.b16 %v821
        %v1000 = vunpack.c.h.b16 %v821
        %v1001 = vunpack.c.l.b16 %v822
        %v1002 = vunpack.c.l.b16 %v823
        %v1003 = vunpack.c.h.b16 %v823
        %v1004 = vunpack.c.l.b16 %v824
        %v1005 = vunpack.c.l.b16 %v825
        %v1006 = vunpack.c.h.b16 %v825
        %v1007 = vunpack.c.l.b16 %v826
        %v1008 = vunpack.c.l.b16 %v827
        %v1009 = vunpack.c.h.b16 %v827
        %v1010 = vunpack.c.l.b16 %v828
        %v1011 = vunpack.c.l.b16 %v829
        %v1012 = vunpack.c.h.b16 %v829
        %v1013 = vunpack.c.l.b16 %v830
        %v1014 = vunpack.c.l.b16 %v831
        %v1015 = vunpack.c.h.b16 %v831
        %v1016 = vunpack.c.l.b16 %v832
        %v1017 = vunpack.c.l.b16 %v833
        %v1018 = vunpack.c.h.b16 %v833
        %v1019 = vunpack.c.l.b16 %v834
        %v1020 = vunpack.c.l.b16 %v835
        %v1021 = vunpack.c.h.b16 %v835
        %v1022 = vunpack.c.l.b16 %v836
        %v1023 = vunpack.c.l.b16 %v837
        %v1024 = vunpack.c.h.b16 %v837
        %v1025 = vunpack.c.l.b16 %v838
        %v1026 = vunpack.c.l.b16 %v839
        %v1027 = vunpack.c.h.b16 %v839
        %v1028 = vunpack.c.l.b16 %v840
        %v1029 = vunpack.c.l.b16 %v841
        %v1030 = vunpack.c.h.b16 %v841
        %v1031 = vunpack.c.l.b16 %v842
        %v1032 = vunpack.c.l.b16 %v843
        %v1033 = vunpack.c.h.b16 %v843
        %v1034 = vunpack.c.l.b16 %v844
        %v1035 = vunpack.c.l.b16 %v845
        %v1036 = vunpack.c.h.b16 %v845
        %v1037 = vunpack.c.l.b16 %v846
        %v1038 = vunpack.c.l.b16 %v847
        %v1039 = vunpack.c.h.b16 %v847
        %v1040 = vunpack.c.l.b16 %v848
        %v1041 = vunpack.c.l.b16 %v849
        %v1042 = vunpack.c.h.b16 %v849
        %v1043 = vunpack.c.l.b16 %v850
        %v1044 = vunpack.c.l.b16 %v851
        %v1045 = vunpack.c.h.b16 %v851
        %v1046 = vunpack.c.l.b16 %v852
        %v1047 = vunpack.c.l.b16 %v853
        %v1048 = vunpack.c.h.b16 %v853
        %v1049 = vunpack.c.l.b16 %v854
        %v1050 = vunpack.c.l.b16 %v855
        %v1051 = vunpack.c.h.b16 %v855
        %v1052 = vunpack.c.l.b16 %v856
        %v1053 = vunpack.c.l.b16 %v857
        %v1054 = vunpack.c.h.b16 %v857
        %v1055 = vunpack.c.l.b16 %v858
        %v1056 = vunpack.c.l.b16 %v859
        %v1057 = vunpack.c.h.b16 %v859
        %v1058 = vunpack.c.l.b16 %v860
        %v1059 = vunpack.c.l.b16 %v861
        %v1060 = vunpack.c.h.b16 %v861
        %v1061 = vunpack.c.l.b16 %v862
        %v1062 = vunpack.c.l.b16 %v863
        %v1063 = vunpack.c.h.b16 %v863
        %v1064 = vunpack.c.l.b16 %v864
        %v1065 = vunpack.c.l.b16 %v865
        %v1066 = vunpack.c.h.b16 %v865
        %v1067 = vunpack.c.l.b16 %v866
        %v1068 = vunpack.c.l.b16 %v867
        %v1069 = vunpack.c.h.b16 %v867
        %v1070 = vunpack.c.l.b16 %v868
        %v1071 = vunpack.c.l.b16 %v869
        %v1072 = vunpack.c.h.b16 %v869
        %v1073 = vunpack.c.l.b16 %v870
        %v1074 = vunpack.c.l.b16 %v871
        %v1075 = vunpack.c.h.b16 %v871
        %v1076 = vunpack.c.l.b16 %v872
        %v1077 = vunpack.c.l.b16 %v873
        %v1078 = vunpack.c.h.b16 %v873
        %v1079 = vunpack.c.l.b16 %v874
        %v1080 = vunpack.c.l.b16 %v875
        %v1081 = vunpack.c.h.b16 %v875
        %v1082 = vunpack.c.l.b16 %v876
        %v1083 = vunpack.c.l.b16 %v877
        %v1084 = vunpack.c.h.b16 %v877
        %v1085 = vunpack.c.l.b16 %v878
        %v1086 = vunpack.c.l.b16 %v879
        %v1087 = vunpack.c.h.b16 %v879
        %v1088 = vunpack.c.l.b16 %v880
        %v1089 = vunpack.c.l.b16 %v881
        %v1090 = vunpack.c.h.b16 %v881
        %v1091 = vunpack.c.l.b16 %v882
        %v1092 = vpack.c.b16 %v999, %v996
        %v1093 = vpack.c.b16 %v1000, %v997
        %v1094 = vpack.c.b16 %v1001, %v998
        %v1095 = vpack.c.b16 %v1005, %v1002
        %v1096 = vpack.c.b16 %v1006, %v1003
        %v1097 = vpack.c.b16 %v1007, %v1004
        %v1098 = vpack.c.b16 %v1011, %v1008
        %v1099 = vpack.c.b16 %v1012, %v1009
        %v1100 = vpack.c.b16 %v1013, %v1010
        %v1101 = vpack.c.b16 %v1017, %v1014
        %v1102 = vpack.c.b16 %v1018, %v1015
        %v1103 = vpack.c.b16 %v1019, %v1016
        %v1104 = vpack.c.b16 %v1023, %v1020
        %v1105 = vpack.c.b16 %v1024, %v1021
        %v1106 = vpack.c.b16 %v1025, %v1022
        %v1107 = vpack.c.b16 %v1029, %v1026
        %v1108 = vpack.c.b16 %v1030, %v1027
        %v1109 = vpack.c.b16 %v1031, %v1028
        %v1110 = vpack.c.b16 %v1035, %v1032
        %v1111 = vpack.c.b16 %v1036, %v1033
        %v1112 = vpack.c.b16 %v1037, %v1034
        %v1113 = vpack.c.b16 %v1041, %v1038
        %v1114 = vpack.c.b16 %v1042, %v1039
        %v1115 = vpack.c.b16 %v1043, %v1040
        %v1116 = vpack.c.b16 %v1047, %v1044
        %v1117 = vpack.c.b16 %v1048, %v1045
        %v1118 = vpack.c.b16 %v1049, %v1046
        %v1119 = vpack.c.b16 %v1053, %v1050
        %v1120 = vpack.c.b16 %v1054, %v1051
        %v1121 = vpack.c.b16 %v1055, %v1052
        %v1122 = vpack.c.b16 %v1059, %v1056
        %v1123 = vpack.c.b16 %v1060, %v1057
        %v1124 = vpack.c.b16 %v1061, %v1058
        %v1125 = vpack.c.b16 %v1065, %v1062
        %v1126 = vpack.c.b16 %v1066, %v1063
        %v1127 = vpack.c.b16 %v1067, %v1064
        %v1128 = vpack.c.b16 %v1071, %v1068
        %v1129 = vpack.c.b16 %v1072, %v1069
        %v1130 = vpack.c.b16 %v1073, %v1070
        %v1131 = vpack.c.b16 %v1077, %v1074
        %v1132 = vpack.c.b16 %v1078, %v1075
        %v1133 = vpack.c.b16 %v1079, %v1076
        %v1134 = vpack.c.b16 %v1083, %v1080
        %v1135 = vpack.c.b16 %v1084, %v1081
        %v1136 = vpack.c.b16 %v1085, %v1082
        %v1137 = vpack.c.b16 %v1089, %v1086
        %v1138 = vpack.c.b16 %v1090, %v1087
        %v1139 = vpack.c.b16 %v1091, %v1088
        %v1236 = vunpack.c.l.b16 %v884
        %v1237 = vunpack.c.l.b16 %v885
        %v1238 = vunpack.c.l.b16 %v886
        %v1239 = vunpack.c.l.b16 %v887
        %v1240 = vunpack.c.l.b16 %v888
        %v1241 = vunpack.c.l.b16 %v889
        %v1242 = vunpack.c.l.b16 %v890
        %v1243 = vunpack.c.l.b16 %v891
        %v1244 = vunpack.c.l.b16 %v892
        %v1245 = vunpack.c.l.b16 %v893
        %v1246 = vunpack.c.l.b16 %v894
        %v1247 = vunpack.c.l.b16 %v895
        %v1248 = vunpack.c.l.b16 %v896
        %v1249 = vunpack.c.l.b16 %v897
        %v1250 = vunpack.c.l.b16 %v898
        %v1251 = vunpack.c.l.b16 %v899
        %v1252 = vunpack.c.l.b16 %v900
        %v1253 = vunpack.c.l.b16 %v901
        %v1254 = vunpack.c.l.b16 %v902
        %v1255 = vunpack.c.l.b16 %v903
        %v1256 = vunpack.c.l.b16 %v904
        %v1257 = vunpack.c.l.b16 %v905
        %v1258 = vunpack.c.l.b16 %v906
        %v1259 = vunpack.c.l.b16 %v907
        %v1260 = vunpack.c.l.b16 %v908
        %v1261 = vunpack.c.l.b16 %v909
        %v1262 = vunpack.c.l.b16 %v910
        %v1263 = vunpack.c.l.b16 %v911
        %v1264 = vunpack.c.l.b16 %v912
        %v1265 = vunpack.c.l.b16 %v913
        %v1266 = vunpack.c.l.b16 %v914
        %v1267 = vunpack.c.l.b16 %v915
        %v1268 = vunpack.c.l.b16 %v916
        %v1269 = vunpack.c.l.b16 %v917
        %v1270 = vunpack.c.l.b16 %v918
        %v1271 = vunpack.c.l.b16 %v919
        %v1272 = vunpack.c.l.b16 %v920
        %v1273 = vunpack.c.l.b16 %v921
        %v1274 = vunpack.c.l.b16 %v922
        %v1275 = vunpack.c.l.b16 %v923
        %v1276 = vunpack.c.l.b16 %v924
        %v1277 = vunpack.c.l.b16 %v925
        %v1278 = vunpack.c.l.b16 %v926
        %v1279 = vunpack.c.l.b16 %v927
        %v1280 = vunpack.c.l.b16 %v928
        %v1281 = vunpack.c.l.b16 %v929
        %v1282 = vunpack.c.l.b16 %v930
        %v1283 = vunpack.c.l.b16 %v931
        %v1284 = vpack.c.b16 %v1237, %v1236
        %v1285 = vpack.c.b16 %v1239, %v1238
        %v1286 = vpack.c.b16 %v1241, %v1240
        %v1287 = vpack.c.b16 %v1243, %v1242
        %v1288 = vpack.c.b16 %v1245, %v1244
        %v1289 = vpack.c.b16 %v1247, %v1246
        %v1290 = vpack.c.b16 %v1249, %v1248
        %v1291 = vpack.c.b16 %v1251, %v1250
        %v1292 = vpack.c.b16 %v1253, %v1252
        %v1293 = vpack.c.b16 %v1255, %v1254
        %v1294 = vpack.c.b16 %v1257, %v1256
        %v1295 = vpack.c.b16 %v1259, %v1258
        %v1296 = vpack.c.b16 %v1261, %v1260
        %v1297 = vpack.c.b16 %v1263, %v1262
        %v1298 = vpack.c.b16 %v1265, %v1264
        %v1299 = vpack.c.b16 %v1267, %v1266
        %v1300 = vpack.c.b16 %v1269, %v1268
        %v1301 = vpack.c.b16 %v1271, %v1270
        %v1302 = vpack.c.b16 %v1273, %v1272
        %v1303 = vpack.c.b16 %v1275, %v1274
        %v1304 = vpack.c.b16 %v1277, %v1276
        %v1305 = vpack.c.b16 %v1279, %v1278
        %v1306 = vpack.c.b16 %v1281, %v1280
        %v1307 = vpack.c.b16 %v1283, %v1282
        %1332 = vmatpush.bf16.msra.mxu0 %v1291
        %1333 = vmatpush.bf16.msra.mxu0 %v1290
        %1334 = vmatpush.bf16.msra.mxu0 %v1289
        %1335 = vmatpush.bf16.msra.mxu0 %v1288
        %1336 = vmatpush.bf16.msra.mxu0 %v1287
        %1337 = vmatpush.bf16.msra.mxu0 %v1286
        %1338 = vmatpush.bf16.msra.mxu0 %v1285
        %1339 = vmatpush.bf16.msra.mxu0 %v1284
        %1340 = vmatmul.bf16.gmra.mxu0 %v1092
        %v1341 = vpop.f32.mrf.mxu0
        %v1342 = vadd.f32 0.0, %v1341
        %v1343 = vpop.f32.mrf.mxu0
        %v1344 = vadd.f32 0.0, %v1343
        %1345 = vmatmul.bf16.gmra.mxu0 %v1095
        %v1346 = vpop.f32.mrf.mxu0
        %v1347 = vadd.f32 0.0, %v1346
        %v1348 = vpop.f32.mrf.mxu0
        %v1349 = vadd.f32 0.0, %v1348
        %1350 = vmatmul.bf16.gmra.mxu0 %v1098
        %v1351 = vpop.f32.mrf.mxu0
        %v1352 = vadd.f32 0.0, %v1351
        %v1353 = vpop.f32.mrf.mxu0
        %v1354 = vadd.f32 0.0, %v1353
        %1355 = vmatmul.bf16.gmra.mxu0 %v1101
        %v1356 = vpop.f32.mrf.mxu0
        %v1357 = vadd.f32 0.0, %v1356
        %v1358 = vpop.f32.mrf.mxu0
        %v1359 = vadd.f32 0.0, %v1358
        %1360 = vmatmul.bf16.gmra.mxu0 %v1104
        %v1361 = vpop.f32.mrf.mxu0
        %v1362 = vadd.f32 0.0, %v1361
        %v1363 = vpop.f32.mrf.mxu0
        %v1364 = vadd.f32 0.0, %v1363
        %1365 = vmatmul.bf16.gmra.mxu0 %v1107
        %v1366 = vpop.f32.mrf.mxu0
        %v1367 = vadd.f32 0.0, %v1366
        %v1368 = vpop.f32.mrf.mxu0
        %v1369 = vadd.f32 0.0, %v1368
        %1370 = vmatmul.bf16.gmra.mxu0 %v1110
        %v1371 = vpop.f32.mrf.mxu0
        %v1372 = vadd.f32 0.0, %v1371
        %v1373 = vpop.f32.mrf.mxu0
        %v1374 = vadd.f32 0.0, %v1373
        %1375 = vmatmul.bf16.gmra.mxu0 %v1113
        %v1376 = vpop.f32.mrf.mxu0
        %v1377 = vadd.f32 0.0, %v1376
        %v1378 = vpop.f32.mrf.mxu0
        %v1379 = vadd.f32 0.0, %v1378
        %1380 = vmatmul.bf16.gmra.mxu0 %v1116
        %v1381 = vpop.f32.mrf.mxu0
        %v1382 = vadd.f32 0.0, %v1381
        %v1383 = vpop.f32.mrf.mxu0
        %v1384 = vadd.f32 0.0, %v1383
        %1385 = vmatmul.bf16.gmra.mxu0 %v1119
        %v1386 = vpop.f32.mrf.mxu0
        %v1387 = vadd.f32 0.0, %v1386
        %v1388 = vpop.f32.mrf.mxu0
        %v1389 = vadd.f32 0.0, %v1388
        %1390 = vmatmul.bf16.gmra.mxu0 %v1122
        %v1391 = vpop.f32.mrf.mxu0
        %v1392 = vadd.f32 0.0, %v1391
        %v1393 = vpop.f32.mrf.mxu0
        %v1394 = vadd.f32 0.0, %v1393
        %1395 = vmatmul.bf16.gmra.mxu0 %v1125
        %v1396 = vpop.f32.mrf.mxu0
        %v1397 = vadd.f32 0.0, %v1396
        %v1398 = vpop.f32.mrf.mxu0
        %v1399 = vadd.f32 0.0, %v1398
        %1400 = vmatmul.bf16.gmra.mxu0 %v1128
        %v1401 = vpop.f32.mrf.mxu0
        %v1402 = vadd.f32 0.0, %v1401
        %v1403 = vpop.f32.mrf.mxu0
        %v1404 = vadd.f32 0.0, %v1403
        %1405 = vmatmul.bf16.gmra.mxu0 %v1131
        %v1406 = vpop.f32.mrf.mxu0
        %v1407 = vadd.f32 0.0, %v1406
        %v1408 = vpop.f32.mrf.mxu0
        %v1409 = vadd.f32 0.0, %v1408
        %1410 = vmatmul.bf16.gmra.mxu0 %v1134
        %v1411 = vpop.f32.mrf.mxu0
        %v1412 = vadd.f32 0.0, %v1411
        %v1413 = vpop.f32.mrf.mxu0
        %v1414 = vadd.f32 0.0, %v1413
        %1415 = vmatmul.bf16.gmra.mxu0 %v1137
        %v1416 = vpop.f32.mrf.mxu0
        %v1417 = vadd.f32 0.0, %v1416
        %v1418 = vpop.f32.mrf.mxu0
        %v1419 = vadd.f32 0.0, %v1418
        %1420 = vdwg.mxu0
        %1421 = vmatpush.bf16.msra.mxu0 %v1299
        %1422 = vmatpush.bf16.msra.mxu0 %v1298
        %1423 = vmatpush.bf16.msra.mxu0 %v1297
        %1424 = vmatpush.bf16.msra.mxu0 %v1296
        %1425 = vmatpush.bf16.msra.mxu0 %v1295
        %1426 = vmatpush.bf16.msra.mxu0 %v1294
        %1427 = vmatpush.bf16.msra.mxu0 %v1293
        %1428 = vmatpush.bf16.msra.mxu0 %v1292
        %1429 = vmatmul.bf16.gmra.mxu0 %v1093
        %v1430 = vpop.f32.mrf.mxu0
        %v1431 = vadd.f32 %v1342, %v1430
        %v1432 = vpop.f32.mrf.mxu0
        %v1433 = vadd.f32 %v1344, %v1432
        %1434 = vmatmul.bf16.gmra.mxu0 %v1096
        %v1435 = vpop.f32.mrf.mxu0
        %v1436 = vadd.f32 %v1347, %v1435
        %v1437 = vpop.f32.mrf.mxu0
        %v1438 = vadd.f32 %v1349, %v1437
        %1439 = vmatmul.bf16.gmra.mxu0 %v1099
        %v1440 = vpop.f32.mrf.mxu0
        %v1441 = vadd.f32 %v1352, %v1440
        %v1442 = vpop.f32.mrf.mxu0
        %v1443 = vadd.f32 %v1354, %v1442
        %1444 = vmatmul.bf16.gmra.mxu0 %v1102
        %v1445 = vpop.f32.mrf.mxu0
        %v1446 = vadd.f32 %v1357, %v1445
        %v1447 = vpop.f32.mrf.mxu0
        %v1448 = vadd.f32 %v1359, %v1447
        %1449 = vmatmul.bf16.gmra.mxu0 %v1105
        %v1450 = vpop.f32.mrf.mxu0
        %v1451 = vadd.f32 %v1362, %v1450
        %v1452 = vpop.f32.mrf.mxu0
        %v1453 = vadd.f32 %v1364, %v1452
        %1454 = vmatmul.bf16.gmra.mxu0 %v1108
        %v1455 = vpop.f32.mrf.mxu0
        %v1456 = vadd.f32 %v1367, %v1455
        %v1457 = vpop.f32.mrf.mxu0
        %v1458 = vadd.f32 %v1369, %v1457
        %1459 = vmatmul.bf16.gmra.mxu0 %v1111
        %v1460 = vpop.f32.mrf.mxu0
        %v1461 = vadd.f32 %v1372, %v1460
        %v1462 = vpop.f32.mrf.mxu0
        %v1463 = vadd.f32 %v1374, %v1462
        %1464 = vmatmul.bf16.gmra.mxu0 %v1114
        %v1465 = vpop.f32.mrf.mxu0
        %v1466 = vadd.f32 %v1377, %v1465
        %v1467 = vpop.f32.mrf.mxu0
        %v1468 = vadd.f32 %v1379, %v1467
        %1469 = vmatmul.bf16.gmra.mxu0 %v1117
        %v1470 = vpop.f32.mrf.mxu0
        %v1471 = vadd.f32 %v1382, %v1470
        %v1472 = vpop.f32.mrf.mxu0
        %v1473 = vadd.f32 %v1384, %v1472
        %1474 = vmatmul.bf16.gmra.mxu0 %v1120
        %v1475 = vpop.f32.mrf.mxu0
        %v1476 = vadd.f32 %v1387, %v1475
        %v1477 = vpop.f32.mrf.mxu0
        %v1478 = vadd.f32 %v1389, %v1477
        %1479 = vmatmul.bf16.gmra.mxu0 %v1123
        %v1480 = vpop.f32.mrf.mxu0
        %v1481 = vadd.f32 %v1392, %v1480
        %v1482 = vpop.f32.mrf.mxu0
        %v1483 = vadd.f32 %v1394, %v1482
        %1484 = vmatmul.bf16.gmra.mxu0 %v1126
        %v1485 = vpop.f32.mrf.mxu0
        %v1486 = vadd.f32 %v1397, %v1485
        %v1487 = vpop.f32.mrf.mxu0
        %v1488 = vadd.f32 %v1399, %v1487
        %1489 = vmatmul.bf16.gmra.mxu0 %v1129
        %v1490 = vpop.f32.mrf.mxu0
        %v1491 = vadd.f32 %v1402, %v1490
        %v1492 = vpop.f32.mrf.mxu0
        %v1493 = vadd.f32 %v1404, %v1492
        %1494 = vmatmul.bf16.gmra.mxu0 %v1132
        %v1495 = vpop.f32.mrf.mxu0
        %v1496 = vadd.f32 %v1407, %v1495
        %v1497 = vpop.f32.mrf.mxu0
        %v1498 = vadd.f32 %v1409, %v1497
        %1499 = vmatmul.bf16.gmra.mxu0 %v1135
        %v1500 = vpop.f32.mrf.mxu0
        %v1501 = vadd.f32 %v1412, %v1500
        %v1502 = vpop.f32.mrf.mxu0
        %v1503 = vadd.f32 %v1414, %v1502
        %1504 = vmatmul.bf16.gmra.mxu0 %v1138
        %v1505 = vpop.f32.mrf.mxu0
        %v1506 = vadd.f32 %v1417, %v1505
        %v1507 = vpop.f32.mrf.mxu0
        %v1508 = vadd.f32 %v1419, %v1507
        %1509 = vdwg.mxu0
        %1510 = vmatpush.bf16.msra.mxu0 %v1307
        %1511 = vmatpush.bf16.msra.mxu0 %v1306
        %1512 = vmatpush.bf16.msra.mxu0 %v1305
        %1513 = vmatpush.bf16.msra.mxu0 %v1304
        %1514 = vmatpush.bf16.msra.mxu0 %v1303
        %1515 = vmatpush.bf16.msra.mxu0 %v1302
        %1516 = vmatpush.bf16.msra.mxu0 %v1301
        %1517 = vmatpush.bf16.msra.mxu0 %v1300
        %1518 = vmatmul.bf16.gmra.mxu0 %v1094
        %v1519 = vpop.f32.mrf.mxu0
        %v1520 = vadd.f32 %v1431, %v1519
        %v1521 = vpop.f32.mrf.mxu0
        %v1522 = vadd.f32 %v1433, %v1521
        %1523 = vmatmul.bf16.gmra.mxu0 %v1097
        %v1524 = vpop.f32.mrf.mxu0
        %v1525 = vadd.f32 %v1436, %v1524
        %v1526 = vpop.f32.mrf.mxu0
        %v1527 = vadd.f32 %v1438, %v1526
        %1528 = vmatmul.bf16.gmra.mxu0 %v1100
        %v1529 = vpop.f32.mrf.mxu0
        %v1530 = vadd.f32 %v1441, %v1529
        %v1531 = vpop.f32.mrf.mxu0
        %v1532 = vadd.f32 %v1443, %v1531
        %1533 = vmatmul.bf16.gmra.mxu0 %v1103
        %v1534 = vpop.f32.mrf.mxu0
        %v1535 = vadd.f32 %v1446, %v1534
        %v1536 = vpop.f32.mrf.mxu0
        %v1537 = vadd.f32 %v1448, %v1536
        %1538 = vmatmul.bf16.gmra.mxu0 %v1106
        %v1539 = vpop.f32.mrf.mxu0
        %v1540 = vadd.f32 %v1451, %v1539
        %v1541 = vpop.f32.mrf.mxu0
        %v1542 = vadd.f32 %v1453, %v1541
        %1543 = vmatmul.bf16.gmra.mxu0 %v1109
        %v1544 = vpop.f32.mrf.mxu0
        %v1545 = vadd.f32 %v1456, %v1544
        %v1546 = vpop.f32.mrf.mxu0
        %v1547 = vadd.f32 %v1458, %v1546
        %1548 = vmatmul.bf16.gmra.mxu0 %v1112
        %v1549 = vpop.f32.mrf.mxu0
        %v1550 = vadd.f32 %v1461, %v1549
        %v1551 = vpop.f32.mrf.mxu0
        %v1552 = vadd.f32 %v1463, %v1551
        %1553 = vmatmul.bf16.gmra.mxu0 %v1115
        %v1554 = vpop.f32.mrf.mxu0
        %v1555 = vadd.f32 %v1466, %v1554
        %v1556 = vpop.f32.mrf.mxu0
        %v1557 = vadd.f32 %v1468, %v1556
        %1558 = vmatmul.bf16.gmra.mxu0 %v1118
        %v1559 = vpop.f32.mrf.mxu0
        %v1560 = vadd.f32 %v1471, %v1559
        %v1561 = vpop.f32.mrf.mxu0
        %v1562 = vadd.f32 %v1473, %v1561
        %1563 = vmatmul.bf16.gmra.mxu0 %v1121
        %v1564 = vpop.f32.mrf.mxu0
        %v1565 = vadd.f32 %v1476, %v1564
        %v1566 = vpop.f32.mrf.mxu0
        %v1567 = vadd.f32 %v1478, %v1566
        %1568 = vmatmul.bf16.gmra.mxu0 %v1124
        %v1569 = vpop.f32.mrf.mxu0
        %v1570 = vadd.f32 %v1481, %v1569
        %v1571 = vpop.f32.mrf.mxu0
        %v1572 = vadd.f32 %v1483, %v1571
        %1573 = vmatmul.bf16.gmra.mxu0 %v1127
        %v1574 = vpop.f32.mrf.mxu0
        %v1575 = vadd.f32 %v1486, %v1574
        %v1576 = vpop.f32.mrf.mxu0
        %v1577 = vadd.f32 %v1488, %v1576
        %1578 = vmatmul.bf16.gmra.mxu0 %v1130
        %v1579 = vpop.f32.mrf.mxu0
        %v1580 = vadd.f32 %v1491, %v1579
        %v1581 = vpop.f32.mrf.mxu0
        %v1582 = vadd.f32 %v1493, %v1581
        %1583 = vmatmul.bf16.gmra.mxu0 %v1133
        %v1584 = vpop.f32.mrf.mxu0
        %v1585 = vadd.f32 %v1496, %v1584
        %v1586 = vpop.f32.mrf.mxu0
        %v1587 = vadd.f32 %v1498, %v1586
        %1588 = vmatmul.bf16.gmra.mxu0 %v1136
        %v1589 = vpop.f32.mrf.mxu0
        %v1590 = vadd.f32 %v1501, %v1589
        %v1591 = vpop.f32.mrf.mxu0
        %v1592 = vadd.f32 %v1503, %v1591
        %1593 = vmatmul.bf16.gmra.mxu0 %v1139
        %v1594 = vpop.f32.mrf.mxu0
        %v1595 = vadd.f32 %v1506, %v1594
        %v1596 = vpop.f32.mrf.mxu0
        %v1597 = vadd.f32 %v1508, %v1596
        %1598 = vdwg.mxu0
        %v1663 = vunpack.c.l.b16 %v707
        %v1664 = vunpack.c.h.b16 %v707
        %v1665 = vunpack.c.l.b16 %v708
        %v1666 = vunpack.c.l.b16 %v709
        %v1667 = vunpack.c.h.b16 %v709
        %v1668 = vunpack.c.l.b16 %v710
        %v1669 = vunpack.c.l.b16 %v711
        %v1670 = vunpack.c.h.b16 %v711
        %v1671 = vunpack.c.l.b16 %v712
        %v1672 = vunpack.c.l.b16 %v713
        %v1673 = vunpack.c.h.b16 %v713
        %v1674 = vunpack.c.l.b16 %v714
        %v1675 = vunpack.c.l.b16 %v715
        %v1676 = vunpack.c.h.b16 %v715
        %v1677 = vunpack.c.l.b16 %v716
        %v1678 = vunpack.c.l.b16 %v717
        %v1679 = vunpack.c.h.b16 %v717
        %v1680 = vunpack.c.l.b16 %v718
        %v1681 = vunpack.c.l.b16 %v719
        %v1682 = vunpack.c.h.b16 %v719
        %v1683 = vunpack.c.l.b16 %v720
        %v1684 = vunpack.c.l.b16 %v721
        %v1685 = vunpack.c.h.b16 %v721
        %v1686 = vunpack.c.l.b16 %v722
        %v1687 = vunpack.c.l.b16 %v723
        %v1688 = vunpack.c.h.b16 %v723
        %v1689 = vunpack.c.l.b16 %v724
        %v1690 = vunpack.c.l.b16 %v725
        %v1691 = vunpack.c.h.b16 %v725
        %v1692 = vunpack.c.l.b16 %v726
        %v1693 = vunpack.c.l.b16 %v727
        %v1694 = vunpack.c.h.b16 %v727
        %v1695 = vunpack.c.l.b16 %v728
        %v1696 = vunpack.c.l.b16 %v729
        %v1697 = vunpack.c.h.b16 %v729
        %v1698 = vunpack.c.l.b16 %v730
        %v1699 = vunpack.c.l.b16 %v731
        %v1700 = vunpack.c.h.b16 %v731
        %v1701 = vunpack.c.l.b16 %v732
        %v1702 = vunpack.c.l.b16 %v733
        %v1703 = vunpack.c.h.b16 %v733
        %v1704 = vunpack.c.l.b16 %v734
        %v1705 = vunpack.c.l.b16 %v735
        %v1706 = vunpack.c.h.b16 %v735
        %v1707 = vunpack.c.l.b16 %v736
        %v1708 = vunpack.c.l.b16 %v737
        %v1709 = vunpack.c.h.b16 %v737
        %v1710 = vunpack.c.l.b16 %v738
        %v1711 = vunpack.c.l.b16 %v739
        %v1712 = vunpack.c.h.b16 %v739
        %v1713 = vunpack.c.l.b16 %v740
        %v1714 = vunpack.c.l.b16 %v741
        %v1715 = vunpack.c.h.b16 %v741
        %v1716 = vunpack.c.l.b16 %v742
        %v1717 = vunpack.c.l.b16 %v743
        %v1718 = vunpack.c.h.b16 %v743
        %v1719 = vunpack.c.l.b16 %v744
        %v1720 = vunpack.c.l.b16 %v745
        %v1721 = vunpack.c.h.b16 %v745
        %v1722 = vunpack.c.l.b16 %v746
        %v1723 = vunpack.c.l.b16 %v747
        %v1724 = vunpack.c.h.b16 %v747
        %v1725 = vunpack.c.l.b16 %v748
        %v1726 = vunpack.c.l.b16 %v749
        %v1727 = vunpack.c.h.b16 %v749
        %v1728 = vunpack.c.l.b16 %v750
        %v1729 = vunpack.c.l.b16 %v751
        %v1730 = vunpack.c.h.b16 %v751
        %v1731 = vunpack.c.l.b16 %v752
        %v1732 = vunpack.c.l.b16 %v753
        %v1733 = vunpack.c.h.b16 %v753
        %v1734 = vunpack.c.l.b16 %v754
        %v1735 = vunpack.c.l.b16 %v755
        %v1736 = vunpack.c.h.b16 %v755
        %v1737 = vunpack.c.l.b16 %v756
        %v1738 = vunpack.c.l.b16 %v757
        %v1739 = vunpack.c.h.b16 %v757
        %v1740 = vunpack.c.l.b16 %v758
        %v1741 = vunpack.c.l.b16 %v759
        %v1742 = vunpack.c.h.b16 %v759
        %v1743 = vunpack.c.l.b16 %v760
        %v1744 = vunpack.c.l.b16 %v761
        %v1745 = vunpack.c.h.b16 %v761
        %v1746 = vunpack.c.l.b16 %v762
        %v1747 = vunpack.c.l.b16 %v763
        %v1748 = vunpack.c.h.b16 %v763
        %v1749 = vunpack.c.l.b16 %v764
        %v1750 = vunpack.c.l.b16 %v765
        %v1751 = vunpack.c.h.b16 %v765
        %v1752 = vunpack.c.l.b16 %v766
        %v1753 = vunpack.c.l.b16 %v767
        %v1754 = vunpack.c.h.b16 %v767
        %v1755 = vunpack.c.l.b16 %v768
        %v1756 = vunpack.c.l.b16 %v769
        %v1757 = vunpack.c.h.b16 %v769
        %v1758 = vunpack.c.l.b16 %v770
        %v1759 = vpack.c.b16 %v1666, %v1663
        %v1760 = vpack.c.b16 %v1667, %v1664
        %v1761 = vpack.c.b16 %v1668, %v1665
        %v1762 = vpack.c.b16 %v1672, %v1669
        %v1763 = vpack.c.b16 %v1673, %v1670
        %v1764 = vpack.c.b16 %v1674, %v1671
        %v1765 = vpack.c.b16 %v1678, %v1675
        %v1766 = vpack.c.b16 %v1679, %v1676
        %v1767 = vpack.c.b16 %v1680, %v1677
        %v1768 = vpack.c.b16 %v1684, %v1681
        %v1769 = vpack.c.b16 %v1685, %v1682
        %v1770 = vpack.c.b16 %v1686, %v1683
        %v1771 = vpack.c.b16 %v1690, %v1687
        %v1772 = vpack.c.b16 %v1691, %v1688
        %v1773 = vpack.c.b16 %v1692, %v1689
        %v1774 = vpack.c.b16 %v1696, %v1693
        %v1775 = vpack.c.b16 %v1697, %v1694
        %v1776 = vpack.c.b16 %v1698, %v1695
        %v1777 = vpack.c.b16 %v1702, %v1699
        %v1778 = vpack.c.b16 %v1703, %v1700
        %v1779 = vpack.c.b16 %v1704, %v1701
        %v1780 = vpack.c.b16 %v1708, %v1705
        %v1781 = vpack.c.b16 %v1709, %v1706
        %v1782 = vpack.c.b16 %v1710, %v1707
        %v1783 = vpack.c.b16 %v1714, %v1711
        %v1784 = vpack.c.b16 %v1715, %v1712
        %v1785 = vpack.c.b16 %v1716, %v1713
        %v1786 = vpack.c.b16 %v1720, %v1717
        %v1787 = vpack.c.b16 %v1721, %v1718
        %v1788 = vpack.c.b16 %v1722, %v1719
        %v1789 = vpack.c.b16 %v1726, %v1723
        %v1790 = vpack.c.b16 %v1727, %v1724
        %v1791 = vpack.c.b16 %v1728, %v1725
        %v1792 = vpack.c.b16 %v1732, %v1729
        %v1793 = vpack.c.b16 %v1733, %v1730
        %v1794 = vpack.c.b16 %v1734, %v1731
        %v1795 = vpack.c.b16 %v1738, %v1735
        %v1796 = vpack.c.b16 %v1739, %v1736
        %v1797 = vpack.c.b16 %v1740, %v1737
        %v1798 = vpack.c.b16 %v1744, %v1741
        %v1799 = vpack.c.b16 %v1745, %v1742
        %v1800 = vpack.c.b16 %v1746, %v1743
        %v1801 = vpack.c.b16 %v1750, %v1747
        %v1802 = vpack.c.b16 %v1751, %v1748
        %v1803 = vpack.c.b16 %v1752, %v1749
        %v1804 = vpack.c.b16 %v1756, %v1753
        %v1805 = vpack.c.b16 %v1757, %v1754
        %v1806 = vpack.c.b16 %v1758, %v1755
        %v1903 = vunpack.c.l.b16 %v771
        %v1904 = vunpack.c.l.b16 %v772
        %v1905 = vunpack.c.l.b16 %v773
        %v1906 = vunpack.c.l.b16 %v774
        %v1907 = vunpack.c.l.b16 %v775
        %v1908 = vunpack.c.l.b16 %v776
        %v1909 = vunpack.c.l.b16 %v777
        %v1910 = vunpack.c.l.b16 %v778
        %v1911 = vunpack.c.l.b16 %v779
        %v1912 = vunpack.c.l.b16 %v780
        %v1913 = vunpack.c.l.b16 %v781
        %v1914 = vunpack.c.l.b16 %v782
        %v1915 = vunpack.c.l.b16 %v783
        %v1916 = vunpack.c.l.b16 %v784
        %v1917 = vunpack.c.l.b16 %v785
        %v1918 = vunpack.c.l.b16 %v786
        %v1919 = vunpack.c.l.b16 %v787
        %v1920 = vunpack.c.l.b16 %v788
        %v1921 = vunpack.c.l.b16 %v789
        %v1922 = vunpack.c.l.b16 %v790
        %v1923 = vunpack.c.l.b16 %v791
        %v1924 = vunpack.c.l.b16 %v792
        %v1925 = vunpack.c.l.b16 %v793
        %v1926 = vunpack.c.l.b16 %v794
        %v1927 = vunpack.c.l.b16 %v795
        %v1928 = vunpack.c.l.b16 %v796
        %v1929 = vunpack.c.l.b16 %v797
        %v1930 = vunpack.c.l.b16 %v798
        %v1931 = vunpack.c.l.b16 %v799
        %v1932 = vunpack.c.l.b16 %v800
        %v1933 = vunpack.c.l.b16 %v801
        %v1934 = vunpack.c.l.b16 %v802
        %v1935 = vunpack.c.l.b16 %v803
        %v1936 = vunpack.c.l.b16 %v804
        %v1937 = vunpack.c.l.b16 %v805
        %v1938 = vunpack.c.l.b16 %v806
        %v1939 = vunpack.c.l.b16 %v807
        %v1940 = vunpack.c.l.b16 %v808
        %v1941 = vunpack.c.l.b16 %v809
        %v1942 = vunpack.c.l.b16 %v810
        %v1943 = vunpack.c.l.b16 %v811
        %v1944 = vunpack.c.l.b16 %v812
        %v1945 = vunpack.c.l.b16 %v813
        %v1946 = vunpack.c.l.b16 %v814
        %v1947 = vunpack.c.l.b16 %v815
        %v1948 = vunpack.c.l.b16 %v816
        %v1949 = vunpack.c.l.b16 %v817
        %v1950 = vunpack.c.l.b16 %v818
        %v1951 = vpack.c.b16 %v1904, %v1903
        %v1952 = vpack.c.b16 %v1906, %v1905
        %v1953 = vpack.c.b16 %v1908, %v1907
        %v1954 = vpack.c.b16 %v1910, %v1909
        %v1955 = vpack.c.b16 %v1912, %v1911
        %v1956 = vpack.c.b16 %v1914, %v1913
        %v1957 = vpack.c.b16 %v1916, %v1915
        %v1958 = vpack.c.b16 %v1918, %v1917
        %v1959 = vpack.c.b16 %v1920, %v1919
        %v1960 = vpack.c.b16 %v1922, %v1921
        %v1961 = vpack.c.b16 %v1924, %v1923
        %v1962 = vpack.c.b16 %v1926, %v1925
        %v1963 = vpack.c.b16 %v1928, %v1927
        %v1964 = vpack.c.b16 %v1930, %v1929
        %v1965 = vpack.c.b16 %v1932, %v1931
        %v1966 = vpack.c.b16 %v1934, %v1933
        %v1967 = vpack.c.b16 %v1936, %v1935
        %v1968 = vpack.c.b16 %v1938, %v1937
        %v1969 = vpack.c.b16 %v1940, %v1939
        %v1970 = vpack.c.b16 %v1942, %v1941
        %v1971 = vpack.c.b16 %v1944, %v1943
        %v1972 = vpack.c.b16 %v1946, %v1945
        %v1973 = vpack.c.b16 %v1948, %v1947
        %v1974 = vpack.c.b16 %v1950, %v1949
        %1999 = vmatpush.bf16.msra.mxu0 %v1958
        %2000 = vmatpush.bf16.msra.mxu0 %v1957
        %2001 = vmatpush.bf16.msra.mxu0 %v1956
        %2002 = vmatpush.bf16.msra.mxu0 %v1955
        %2003 = vmatpush.bf16.msra.mxu0 %v1954
        %2004 = vmatpush.bf16.msra.mxu0 %v1953
        %2005 = vmatpush.bf16.msra.mxu0 %v1952
        %2006 = vmatpush.bf16.msra.mxu0 %v1951
        %2007 = vmatmul.bf16.gmra.mxu0 %v1759
        %v2008 = vpop.f32.mrf.mxu0
        %v2009 = vadd.f32 %v1520, %v2008
        %v2010 = vpop.f32.mrf.mxu0
        %v2011 = vadd.f32 %v1522, %v2010
        %2012 = vmatmul.bf16.gmra.mxu0 %v1762
        %v2013 = vpop.f32.mrf.mxu0
        %v2014 = vadd.f32 %v1525, %v2013
        %v2015 = vpop.f32.mrf.mxu0
        %v2016 = vadd.f32 %v1527, %v2015
        %2017 = vmatmul.bf16.gmra.mxu0 %v1765
        %v2018 = vpop.f32.mrf.mxu0
        %v2019 = vadd.f32 %v1530, %v2018
        %v2020 = vpop.f32.mrf.mxu0
        %v2021 = vadd.f32 %v1532, %v2020
        %2022 = vmatmul.bf16.gmra.mxu0 %v1768
        %v2023 = vpop.f32.mrf.mxu0
        %v2024 = vadd.f32 %v1535, %v2023
        %v2025 = vpop.f32.mrf.mxu0
        %v2026 = vadd.f32 %v1537, %v2025
        %2027 = vmatmul.bf16.gmra.mxu0 %v1771
        %v2028 = vpop.f32.mrf.mxu0
        %v2029 = vadd.f32 %v1540, %v2028
        %v2030 = vpop.f32.mrf.mxu0
        %v2031 = vadd.f32 %v1542, %v2030
        %2032 = vmatmul.bf16.gmra.mxu0 %v1774
        %v2033 = vpop.f32.mrf.mxu0
        %v2034 = vadd.f32 %v1545, %v2033
        %v2035 = vpop.f32.mrf.mxu0
        %v2036 = vadd.f32 %v1547, %v2035
        %2037 = vmatmul.bf16.gmra.mxu0 %v1777
        %v2038 = vpop.f32.mrf.mxu0
        %v2039 = vadd.f32 %v1550, %v2038
        %v2040 = vpop.f32.mrf.mxu0
        %v2041 = vadd.f32 %v1552, %v2040
        %2042 = vmatmul.bf16.gmra.mxu0 %v1780
        %v2043 = vpop.f32.mrf.mxu0
        %v2044 = vadd.f32 %v1555, %v2043
        %v2045 = vpop.f32.mrf.mxu0
        %v2046 = vadd.f32 %v1557, %v2045
        %2047 = vmatmul.bf16.gmra.mxu0 %v1783
        %v2048 = vpop.f32.mrf.mxu0
        %v2049 = vadd.f32 %v1560, %v2048
        %v2050 = vpop.f32.mrf.mxu0
        %v2051 = vadd.f32 %v1562, %v2050
        %2052 = vmatmul.bf16.gmra.mxu0 %v1786
        %v2053 = vpop.f32.mrf.mxu0
        %v2054 = vadd.f32 %v1565, %v2053
        %v2055 = vpop.f32.mrf.mxu0
        %v2056 = vadd.f32 %v1567, %v2055
        %2057 = vmatmul.bf16.gmra.mxu0 %v1789
        %v2058 = vpop.f32.mrf.mxu0
        %v2059 = vadd.f32 %v1570, %v2058
        %v2060 = vpop.f32.mrf.mxu0
        %v2061 = vadd.f32 %v1572, %v2060
        %2062 = vmatmul.bf16.gmra.mxu0 %v1792
        %v2063 = vpop.f32.mrf.mxu0
        %v2064 = vadd.f32 %v1575, %v2063
        %v2065 = vpop.f32.mrf.mxu0
        %v2066 = vadd.f32 %v1577, %v2065
        %2067 = vmatmul.bf16.gmra.mxu0 %v1795
        %v2068 = vpop.f32.mrf.mxu0
        %v2069 = vadd.f32 %v1580, %v2068
        %v2070 = vpop.f32.mrf.mxu0
        %v2071 = vadd.f32 %v1582, %v2070
        %2072 = vmatmul.bf16.gmra.mxu0 %v1798
        %v2073 = vpop.f32.mrf.mxu0
        %v2074 = vadd.f32 %v1585, %v2073
        %v2075 = vpop.f32.mrf.mxu0
        %v2076 = vadd.f32 %v1587, %v2075
        %2077 = vmatmul.bf16.gmra.mxu0 %v1801
        %v2078 = vpop.f32.mrf.mxu0
        %v2079 = vadd.f32 %v1590, %v2078
        %v2080 = vpop.f32.mrf.mxu0
        %v2081 = vadd.f32 %v1592, %v2080
        %2082 = vmatmul.bf16.gmra.mxu0 %v1804
        %v2083 = vpop.f32.mrf.mxu0
        %v2084 = vadd.f32 %v1595, %v2083
        %v2085 = vpop.f32.mrf.mxu0
        %v2086 = vadd.f32 %v1597, %v2085
        %2087 = vdwg.mxu0
        %2088 = vmatpush.bf16.msra.mxu0 %v1966
        %2089 = vmatpush.bf16.msra.mxu0 %v1965
        %2090 = vmatpush.bf16.msra.mxu0 %v1964
        %2091 = vmatpush.bf16.msra.mxu0 %v1963
        %2092 = vmatpush.bf16.msra.mxu0 %v1962
        %2093 = vmatpush.bf16.msra.mxu0 %v1961
        %2094 = vmatpush.bf16.msra.mxu0 %v1960
        %2095 = vmatpush.bf16.msra.mxu0 %v1959
        %2096 = vmatmul.bf16.gmra.mxu0 %v1760
        %v2097 = vpop.f32.mrf.mxu0
        %v2098 = vadd.f32 %v2009, %v2097
        %v2099 = vpop.f32.mrf.mxu0
        %v2100 = vadd.f32 %v2011, %v2099
        %2101 = vmatmul.bf16.gmra.mxu0 %v1763
        %v2102 = vpop.f32.mrf.mxu0
        %v2103 = vadd.f32 %v2014, %v2102
        %v2104 = vpop.f32.mrf.mxu0
        %v2105 = vadd.f32 %v2016, %v2104
        %2106 = vmatmul.bf16.gmra.mxu0 %v1766
        %v2107 = vpop.f32.mrf.mxu0
        %v2108 = vadd.f32 %v2019, %v2107
        %v2109 = vpop.f32.mrf.mxu0
        %v2110 = vadd.f32 %v2021, %v2109
        %2111 = vmatmul.bf16.gmra.mxu0 %v1769
        %v2112 = vpop.f32.mrf.mxu0
        %v2113 = vadd.f32 %v2024, %v2112
        %v2114 = vpop.f32.mrf.mxu0
        %v2115 = vadd.f32 %v2026, %v2114
        %2116 = vmatmul.bf16.gmra.mxu0 %v1772
        %v2117 = vpop.f32.mrf.mxu0
        %v2118 = vadd.f32 %v2029, %v2117
        %v2119 = vpop.f32.mrf.mxu0
        %v2120 = vadd.f32 %v2031, %v2119
        %2121 = vmatmul.bf16.gmra.mxu0 %v1775
        %v2122 = vpop.f32.mrf.mxu0
        %v2123 = vadd.f32 %v2034, %v2122
        %v2124 = vpop.f32.mrf.mxu0
        %v2125 = vadd.f32 %v2036, %v2124
        %2126 = vmatmul.bf16.gmra.mxu0 %v1778
        %v2127 = vpop.f32.mrf.mxu0
        %v2128 = vadd.f32 %v2039, %v2127
        %v2129 = vpop.f32.mrf.mxu0
        %v2130 = vadd.f32 %v2041, %v2129
        %2131 = vmatmul.bf16.gmra.mxu0 %v1781
        %v2132 = vpop.f32.mrf.mxu0
        %v2133 = vadd.f32 %v2044, %v2132
        %v2134 = vpop.f32.mrf.mxu0
        %v2135 = vadd.f32 %v2046, %v2134
        %2136 = vmatmul.bf16.gmra.mxu0 %v1784
        %v2137 = vpop.f32.mrf.mxu0
        %v2138 = vadd.f32 %v2049, %v2137
        %v2139 = vpop.f32.mrf.mxu0
        %v2140 = vadd.f32 %v2051, %v2139
        %2141 = vmatmul.bf16.gmra.mxu0 %v1787
        %v2142 = vpop.f32.mrf.mxu0
        %v2143 = vadd.f32 %v2054, %v2142
        %v2144 = vpop.f32.mrf.mxu0
        %v2145 = vadd.f32 %v2056, %v2144
        %2146 = vmatmul.bf16.gmra.mxu0 %v1790
        %v2147 = vpop.f32.mrf.mxu0
        %v2148 = vadd.f32 %v2059, %v2147
        %v2149 = vpop.f32.mrf.mxu0
        %v2150 = vadd.f32 %v2061, %v2149
        %2151 = vmatmul.bf16.gmra.mxu0 %v1793
        %v2152 = vpop.f32.mrf.mxu0
        %v2153 = vadd.f32 %v2064, %v2152
        %v2154 = vpop.f32.mrf.mxu0
        %v2155 = vadd.f32 %v2066, %v2154
        %2156 = vmatmul.bf16.gmra.mxu0 %v1796
        %v2157 = vpop.f32.mrf.mxu0
        %v2158 = vadd.f32 %v2069, %v2157
        %v2159 = vpop.f32.mrf.mxu0
        %v2160 = vadd.f32 %v2071, %v2159
        %2161 = vmatmul.bf16.gmra.mxu0 %v1799
        %v2162 = vpop.f32.mrf.mxu0
        %v2163 = vadd.f32 %v2074, %v2162
        %v2164 = vpop.f32.mrf.mxu0
        %v2165 = vadd.f32 %v2076, %v2164
        %2166 = vmatmul.bf16.gmra.mxu0 %v1802
        %v2167 = vpop.f32.mrf.mxu0
        %v2168 = vadd.f32 %v2079, %v2167
        %v2169 = vpop.f32.mrf.mxu0
        %v2170 = vadd.f32 %v2081, %v2169
        %2171 = vmatmul.bf16.gmra.mxu0 %v1805
        %v2172 = vpop.f32.mrf.mxu0
        %v2173 = vadd.f32 %v2084, %v2172
        %v2174 = vpop.f32.mrf.mxu0
        %v2175 = vadd.f32 %v2086, %v2174
        %2176 = vdwg.mxu0
        %2177 = vmatpush.bf16.msra.mxu0 %v1974
        %2178 = vmatpush.bf16.msra.mxu0 %v1973
        %2179 = vmatpush.bf16.msra.mxu0 %v1972
        %2180 = vmatpush.bf16.msra.mxu0 %v1971
        %2181 = vmatpush.bf16.msra.mxu0 %v1970
        %2182 = vmatpush.bf16.msra.mxu0 %v1969
        %2183 = vmatpush.bf16.msra.mxu0 %v1968
        %2184 = vmatpush.bf16.msra.mxu0 %v1967
        %2185 = vmatmul.bf16.gmra.mxu0 %v1761
        %v2186 = vpop.f32.mrf.mxu0
        %v2187 = vadd.f32 %v2098, %v2186
        %v2188 = vpop.f32.mrf.mxu0
        %v2189 = vadd.f32 %v2100, %v2188
        %2190 = vmatmul.bf16.gmra.mxu0 %v1764
        %v2191 = vpop.f32.mrf.mxu0
        %v2192 = vadd.f32 %v2103, %v2191
        %v2193 = vpop.f32.mrf.mxu0
        %v2194 = vadd.f32 %v2105, %v2193
        %2195 = vmatmul.bf16.gmra.mxu0 %v1767
        %v2196 = vpop.f32.mrf.mxu0
        %v2197 = vadd.f32 %v2108, %v2196
        %v2198 = vpop.f32.mrf.mxu0
        %v2199 = vadd.f32 %v2110, %v2198
        %2200 = vmatmul.bf16.gmra.mxu0 %v1770
        %v2201 = vpop.f32.mrf.mxu0
        %v2202 = vadd.f32 %v2113, %v2201
        %v2203 = vpop.f32.mrf.mxu0
        %v2204 = vadd.f32 %v2115, %v2203
        %2205 = vmatmul.bf16.gmra.mxu0 %v1773
        %v2206 = vpop.f32.mrf.mxu0
        %v2207 = vadd.f32 %v2118, %v2206
        %v2208 = vpop.f32.mrf.mxu0
        %v2209 = vadd.f32 %v2120, %v2208
        %2210 = vmatmul.bf16.gmra.mxu0 %v1776
        %v2211 = vpop.f32.mrf.mxu0
        %v2212 = vadd.f32 %v2123, %v2211
        %v2213 = vpop.f32.mrf.mxu0
        %v2214 = vadd.f32 %v2125, %v2213
        %2215 = vmatmul.bf16.gmra.mxu0 %v1779
        %v2216 = vpop.f32.mrf.mxu0
        %v2217 = vadd.f32 %v2128, %v2216
        %v2218 = vpop.f32.mrf.mxu0
        %v2219 = vadd.f32 %v2130, %v2218
        %2220 = vmatmul.bf16.gmra.mxu0 %v1782
        %v2221 = vpop.f32.mrf.mxu0
        %v2222 = vadd.f32 %v2133, %v2221
        %v2223 = vpop.f32.mrf.mxu0
        %v2224 = vadd.f32 %v2135, %v2223
        %2225 = vmatmul.bf16.gmra.mxu0 %v1785
        %v2226 = vpop.f32.mrf.mxu0
        %v2227 = vadd.f32 %v2138, %v2226
        %v2228 = vpop.f32.mrf.mxu0
        %v2229 = vadd.f32 %v2140, %v2228
        %2230 = vmatmul.bf16.gmra.mxu0 %v1788
        %v2231 = vpop.f32.mrf.mxu0
        %v2232 = vadd.f32 %v2143, %v2231
        %v2233 = vpop.f32.mrf.mxu0
        %v2234 = vadd.f32 %v2145, %v2233
        %2235 = vmatmul.bf16.gmra.mxu0 %v1791
        %v2236 = vpop.f32.mrf.mxu0
        %v2237 = vadd.f32 %v2148, %v2236
        %v2238 = vpop.f32.mrf.mxu0
        %v2239 = vadd.f32 %v2150, %v2238
        %2240 = vmatmul.bf16.gmra.mxu0 %v1794
        %v2241 = vpop.f32.mrf.mxu0
        %v2242 = vadd.f32 %v2153, %v2241
        %v2243 = vpop.f32.mrf.mxu0
        %v2244 = vadd.f32 %v2155, %v2243
        %2245 = vmatmul.bf16.gmra.mxu0 %v1797
        %v2246 = vpop.f32.mrf.mxu0
        %v2247 = vadd.f32 %v2158, %v2246
        %v2248 = vpop.f32.mrf.mxu0
        %v2249 = vadd.f32 %v2160, %v2248
        %2250 = vmatmul.bf16.gmra.mxu0 %v1800
        %v2251 = vpop.f32.mrf.mxu0
        %v2252 = vadd.f32 %v2163, %v2251
        %v2253 = vpop.f32.mrf.mxu0
        %v2254 = vadd.f32 %v2165, %v2253
        %2255 = vmatmul.bf16.gmra.mxu0 %v1803
        %v2256 = vpop.f32.mrf.mxu0
        %v2257 = vadd.f32 %v2168, %v2256
        %v2258 = vpop.f32.mrf.mxu0
        %v2259 = vadd.f32 %v2170, %v2258
        %2260 = vmatmul.bf16.gmra.mxu0 %v1806
        %v2261 = vpop.f32.mrf.mxu0
        %v2262 = vadd.f32 %v2173, %v2261
        %v2263 = vpop.f32.mrf.mxu0
        %v2264 = vadd.f32 %v2175, %v2263
        %2265 = vdwg.mxu0
        %s2266 = scalar_lea.vmem [#allocation2], 48
        %v2267 = vld [vmem:[%s2266] sm:$0xff]
        %v2268 = vld [vmem:[%s2266 + $0x8] sm:$0xf]
        %v2269 = vld [vmem:[%s2266 + $0xc] sm:$0xff]
        %v2270 = vld [vmem:[%s2266 + $0x14] sm:$0xf]
        %v2271 = vld [vmem:[%s2266 + $0x18] sm:$0xff]
        %v2272 = vld [vmem:[%s2266 + $0x20] sm:$0xf]
        %v2273 = vld [vmem:[%s2266 + $0x24] sm:$0xff]
        %v2274 = vld [vmem:[%s2266 + $0x2c] sm:$0xf]
        %v2275 = vld [vmem:[%s2266 + $0x30] sm:$0xff]
        %v2276 = vld [vmem:[%s2266 + $0x38] sm:$0xf]
        %v2277 = vld [vmem:[%s2266 + $0x3c] sm:$0xff]
        %v2278 = vld [vmem:[%s2266 + $0x44] sm:$0xf]
        %v2279 = vld [vmem:[%s2266 + $0x48] sm:$0xff]
        %v2280 = vld [vmem:[%s2266 + $0x50] sm:$0xf]
        %v2281 = vld [vmem:[%s2266 + $0x54] sm:$0xff]
        %v2282 = vld [vmem:[%s2266 + $0x5c] sm:$0xf]
        %v2283 = vld [vmem:[%s2266 + $0x60] sm:$0xff]
        %v2284 = vld [vmem:[%s2266 + $0x68] sm:$0xf]
        %v2285 = vld [vmem:[%s2266 + $0x6c] sm:$0xff]
        %v2286 = vld [vmem:[%s2266 + $0x74] sm:$0xf]
        %v2287 = vld [vmem:[%s2266 + $0x78] sm:$0xff]
        %v2288 = vld [vmem:[%s2266 + $0x80] sm:$0xf]
        %v2289 = vld [vmem:[%s2266 + $0x84] sm:$0xff]
        %v2290 = vld [vmem:[%s2266 + $0x8c] sm:$0xf]
        %v2291 = vld [vmem:[%s2266 + $0x90] sm:$0xff]
        %v2292 = vld [vmem:[%s2266 + $0x98] sm:$0xf]
        %v2293 = vld [vmem:[%s2266 + $0x9c] sm:$0xff]
        %v2294 = vld [vmem:[%s2266 + $0xa4] sm:$0xf]
        %v2295 = vld [vmem:[%s2266 + $0xa8] sm:$0xff]
        %v2296 = vld [vmem:[%s2266 + $0xb0] sm:$0xf]
        %v2297 = vld [vmem:[%s2266 + $0xb4] sm:$0xff]
        %v2298 = vld [vmem:[%s2266 + $0xbc] sm:$0xf]
        %v2299 = vld [vmem:[%s2266 + $0xc0] sm:$0xff]
        %v2300 = vld [vmem:[%s2266 + $0xc8] sm:$0xf]
        %v2301 = vld [vmem:[%s2266 + $0xcc] sm:$0xff]
        %v2302 = vld [vmem:[%s2266 + $0xd4] sm:$0xf]
        %v2303 = vld [vmem:[%s2266 + $0xd8] sm:$0xff]
        %v2304 = vld [vmem:[%s2266 + $0xe0] sm:$0xf]
        %v2305 = vld [vmem:[%s2266 + $0xe4] sm:$0xff]
        %v2306 = vld [vmem:[%s2266 + $0xec] sm:$0xf]
        %v2307 = vld [vmem:[%s2266 + $0xf0] sm:$0xff]
        %v2308 = vld [vmem:[%s2266 + $0xf8] sm:$0xf]
        %v2309 = vld [vmem:[%s2266 + $0xfc] sm:$0xff]
        %v2310 = vld [vmem:[%s2266 + $0x104] sm:$0xf]
        %v2311 = vld [vmem:[%s2266 + $0x108] sm:$0xff]
        %v2312 = vld [vmem:[%s2266 + $0x110] sm:$0xf]
        %v2313 = vld [vmem:[%s2266 + $0x114] sm:$0xff]
        %v2314 = vld [vmem:[%s2266 + $0x11c] sm:$0xf]
        %v2315 = vld [vmem:[%s2266 + $0x120] sm:$0xff]
        %v2316 = vld [vmem:[%s2266 + $0x128] sm:$0xf]
        %v2317 = vld [vmem:[%s2266 + $0x12c] sm:$0xff]
        %v2318 = vld [vmem:[%s2266 + $0x134] sm:$0xf]
        %v2319 = vld [vmem:[%s2266 + $0x138] sm:$0xff]
        %v2320 = vld [vmem:[%s2266 + $0x140] sm:$0xf]
        %v2321 = vld [vmem:[%s2266 + $0x144] sm:$0xff]
        %v2322 = vld [vmem:[%s2266 + $0x14c] sm:$0xf]
        %v2323 = vld [vmem:[%s2266 + $0x150] sm:$0xff]
        %v2324 = vld [vmem:[%s2266 + $0x158] sm:$0xf]
        %v2325 = vld [vmem:[%s2266 + $0x15c] sm:$0xff]
        %v2326 = vld [vmem:[%s2266 + $0x164] sm:$0xf]
        %v2327 = vld [vmem:[%s2266 + $0x168] sm:$0xff]
        %v2328 = vld [vmem:[%s2266 + $0x170] sm:$0xf]
        %v2329 = vld [vmem:[%s2266 + $0x174] sm:$0xff]
        %v2330 = vld [vmem:[%s2266 + $0x17c] sm:$0xf]
        %s2331 = scalar_lea.vmem [#allocation6], 384
        %v2332 = vld [vmem:[%s2331] sm:$0xf]
        %v2333 = vld [vmem:[%s2331 + $0x4] sm:$0xf]
        %v2334 = vld [vmem:[%s2331 + $0x8] sm:$0xf]
        %v2335 = vld [vmem:[%s2331 + $0xc] sm:$0xf]
        %v2336 = vld [vmem:[%s2331 + $0x10] sm:$0xf]
        %v2337 = vld [vmem:[%s2331 + $0x14] sm:$0xf]
        %v2338 = vld [vmem:[%s2331 + $0x18] sm:$0xf]
        %v2339 = vld [vmem:[%s2331 + $0x1c] sm:$0xf]
        %v2340 = vld [vmem:[%s2331 + $0x20] sm:$0xf]
        %v2341 = vld [vmem:[%s2331 + $0x24] sm:$0xf]
        %v2342 = vld [vmem:[%s2331 + $0x28] sm:$0xf]
        %v2343 = vld [vmem:[%s2331 + $0x2c] sm:$0xf]
        %v2344 = vld [vmem:[%s2331 + $0x30] sm:$0xf]
        %v2345 = vld [vmem:[%s2331 + $0x34] sm:$0xf]
        %v2346 = vld [vmem:[%s2331 + $0x38] sm:$0xf]
        %v2347 = vld [vmem:[%s2331 + $0x3c] sm:$0xf]
        %v2348 = vld [vmem:[%s2331 + $0x40] sm:$0xf]
        %v2349 = vld [vmem:[%s2331 + $0x44] sm:$0xf]
        %v2350 = vld [vmem:[%s2331 + $0x48] sm:$0xf]
        %v2351 = vld [vmem:[%s2331 + $0x4c] sm:$0xf]
        %v2352 = vld [vmem:[%s2331 + $0x50] sm:$0xf]
        %v2353 = vld [vmem:[%s2331 + $0x54] sm:$0xf]
        %v2354 = vld [vmem:[%s2331 + $0x58] sm:$0xf]
        %v2355 = vld [vmem:[%s2331 + $0x5c] sm:$0xf]
        %v2356 = vld [vmem:[%s2331 + $0x60] sm:$0xf]
        %v2357 = vld [vmem:[%s2331 + $0x64] sm:$0xf]
        %v2358 = vld [vmem:[%s2331 + $0x68] sm:$0xf]
        %v2359 = vld [vmem:[%s2331 + $0x6c] sm:$0xf]
        %v2360 = vld [vmem:[%s2331 + $0x70] sm:$0xf]
        %v2361 = vld [vmem:[%s2331 + $0x74] sm:$0xf]
        %v2362 = vld [vmem:[%s2331 + $0x78] sm:$0xf]
        %v2363 = vld [vmem:[%s2331 + $0x7c] sm:$0xf]
        %v2364 = vld [vmem:[%s2331 + $0x80] sm:$0xf]
        %v2365 = vld [vmem:[%s2331 + $0x84] sm:$0xf]
        %v2366 = vld [vmem:[%s2331 + $0x88] sm:$0xf]
        %v2367 = vld [vmem:[%s2331 + $0x8c] sm:$0xf]
        %v2368 = vld [vmem:[%s2331 + $0x90] sm:$0xf]
        %v2369 = vld [vmem:[%s2331 + $0x94] sm:$0xf]
        %v2370 = vld [vmem:[%s2331 + $0x98] sm:$0xf]
        %v2371 = vld [vmem:[%s2331 + $0x9c] sm:$0xf]
        %v2372 = vld [vmem:[%s2331 + $0xa0] sm:$0xf]
        %v2373 = vld [vmem:[%s2331 + $0xa4] sm:$0xf]
        %v2374 = vld [vmem:[%s2331 + $0xa8] sm:$0xf]
        %v2375 = vld [vmem:[%s2331 + $0xac] sm:$0xf]
        %v2376 = vld [vmem:[%s2331 + $0xb0] sm:$0xf]
        %v2377 = vld [vmem:[%s2331 + $0xb4] sm:$0xf]
        %v2378 = vld [vmem:[%s2331 + $0xb8] sm:$0xf]
        %v2379 = vld [vmem:[%s2331 + $0xbc] sm:$0xf]
        %v2444 = vunpack.c.l.b16 %v2267
        %v2445 = vunpack.c.h.b16 %v2267
        %v2446 = vunpack.c.l.b16 %v2268
        %v2447 = vunpack.c.l.b16 %v2269
        %v2448 = vunpack.c.h.b16 %v2269
        %v2449 = vunpack.c.l.b16 %v2270
        %v2450 = vunpack.c.l.b16 %v2271
        %v2451 = vunpack.c.h.b16 %v2271
        %v2452 = vunpack.c.l.b16 %v2272
        %v2453 = vunpack.c.l.b16 %v2273
        %v2454 = vunpack.c.h.b16 %v2273
        %v2455 = vunpack.c.l.b16 %v2274
        %v2456 = vunpack.c.l.b16 %v2275
        %v2457 = vunpack.c.h.b16 %v2275
        %v2458 = vunpack.c.l.b16 %v2276
        %v2459 = vunpack.c.l.b16 %v2277
        %v2460 = vunpack.c.h.b16 %v2277
        %v2461 = vunpack.c.l.b16 %v2278
        %v2462 = vunpack.c.l.b16 %v2279
        %v2463 = vunpack.c.h.b16 %v2279
        %v2464 = vunpack.c.l.b16 %v2280
        %v2465 = vunpack.c.l.b16 %v2281
        %v2466 = vunpack.c.h.b16 %v2281
        %v2467 = vunpack.c.l.b16 %v2282
        %v2468 = vunpack.c.l.b16 %v2283
        %v2469 = vunpack.c.h.b16 %v2283
        %v2470 = vunpack.c.l.b16 %v2284
        %v2471 = vunpack.c.l.b16 %v2285
        %v2472 = vunpack.c.h.b16 %v2285
        %v2473 = vunpack.c.l.b16 %v2286
        %v2474 = vunpack.c.l.b16 %v2287
        %v2475 = vunpack.c.h.b16 %v2287
        %v2476 = vunpack.c.l.b16 %v2288
        %v2477 = vunpack.c.l.b16 %v2289
        %v2478 = vunpack.c.h.b16 %v2289
        %v2479 = vunpack.c.l.b16 %v2290
        %v2480 = vunpack.c.l.b16 %v2291
        %v2481 = vunpack.c.h.b16 %v2291
        %v2482 = vunpack.c.l.b16 %v2292
        %v2483 = vunpack.c.l.b16 %v2293
        %v2484 = vunpack.c.h.b16 %v2293
        %v2485 = vunpack.c.l.b16 %v2294
        %v2486 = vunpack.c.l.b16 %v2295
        %v2487 = vunpack.c.h.b16 %v2295
        %v2488 = vunpack.c.l.b16 %v2296
        %v2489 = vunpack.c.l.b16 %v2297
        %v2490 = vunpack.c.h.b16 %v2297
        %v2491 = vunpack.c.l.b16 %v2298
        %v2492 = vunpack.c.l.b16 %v2299
        %v2493 = vunpack.c.h.b16 %v2299
        %v2494 = vunpack.c.l.b16 %v2300
        %v2495 = vunpack.c.l.b16 %v2301
        %v2496 = vunpack.c.h.b16 %v2301
        %v2497 = vunpack.c.l.b16 %v2302
        %v2498 = vunpack.c.l.b16 %v2303
        %v2499 = vunpack.c.h.b16 %v2303
        %v2500 = vunpack.c.l.b16 %v2304
        %v2501 = vunpack.c.l.b16 %v2305
        %v2502 = vunpack.c.h.b16 %v2305
        %v2503 = vunpack.c.l.b16 %v2306
        %v2504 = vunpack.c.l.b16 %v2307
        %v2505 = vunpack.c.h.b16 %v2307
        %v2506 = vunpack.c.l.b16 %v2308
        %v2507 = vunpack.c.l.b16 %v2309
        %v2508 = vunpack.c.h.b16 %v2309
        %v2509 = vunpack.c.l.b16 %v2310
        %v2510 = vunpack.c.l.b16 %v2311
        %v2511 = vunpack.c.h.b16 %v2311
        %v2512 = vunpack.c.l.b16 %v2312
        %v2513 = vunpack.c.l.b16 %v2313
        %v2514 = vunpack.c.h.b16 %v2313
        %v2515 = vunpack.c.l.b16 %v2314
        %v2516 = vunpack.c.l.b16 %v2315
        %v2517 = vunpack.c.h.b16 %v2315
        %v2518 = vunpack.c.l.b16 %v2316
        %v2519 = vunpack.c.l.b16 %v2317
        %v2520 = vunpack.c.h.b16 %v2317
        %v2521 = vunpack.c.l.b16 %v2318
        %v2522 = vunpack.c.l.b16 %v2319
        %v2523 = vunpack.c.h.b16 %v2319
        %v2524 = vunpack.c.l.b16 %v2320
        %v2525 = vunpack.c.l.b16 %v2321
        %v2526 = vunpack.c.h.b16 %v2321
        %v2527 = vunpack.c.l.b16 %v2322
        %v2528 = vunpack.c.l.b16 %v2323
        %v2529 = vunpack.c.h.b16 %v2323
        %v2530 = vunpack.c.l.b16 %v2324
        %v2531 = vunpack.c.l.b16 %v2325
        %v2532 = vunpack.c.h.b16 %v2325
        %v2533 = vunpack.c.l.b16 %v2326
        %v2534 = vunpack.c.l.b16 %v2327
        %v2535 = vunpack.c.h.b16 %v2327
        %v2536 = vunpack.c.l.b16 %v2328
        %v2537 = vunpack.c.l.b16 %v2329
        %v2538 = vunpack.c.h.b16 %v2329
        %v2539 = vunpack.c.l.b16 %v2330
        %v2540 = vpack.c.b16 %v2447, %v2444
        %v2541 = vpack.c.b16 %v2448, %v2445
        %v2542 = vpack.c.b16 %v2449, %v2446
        %v2543 = vpack.c.b16 %v2453, %v2450
        %v2544 = vpack.c.b16 %v2454, %v2451
        %v2545 = vpack.c.b16 %v2455, %v2452
        %v2546 = vpack.c.b16 %v2459, %v2456
        %v2547 = vpack.c.b16 %v2460, %v2457
        %v2548 = vpack.c.b16 %v2461, %v2458
        %v2549 = vpack.c.b16 %v2465, %v2462
        %v2550 = vpack.c.b16 %v2466, %v2463
        %v2551 = vpack.c.b16 %v2467, %v2464
        %v2552 = vpack.c.b16 %v2471, %v2468
        %v2553 = vpack.c.b16 %v2472, %v2469
        %v2554 = vpack.c.b16 %v2473, %v2470
        %v2555 = vpack.c.b16 %v2477, %v2474
        %v2556 = vpack.c.b16 %v2478, %v2475
        %v2557 = vpack.c.b16 %v2479, %v2476
        %v2558 = vpack.c.b16 %v2483, %v2480
        %v2559 = vpack.c.b16 %v2484, %v2481
        %v2560 = vpack.c.b16 %v2485, %v2482
        %v2561 = vpack.c.b16 %v2489, %v2486
        %v2562 = vpack.c.b16 %v2490, %v2487
        %v2563 = vpack.c.b16 %v2491, %v2488
        %v2564 = vpack.c.b16 %v2495, %v2492
        %v2565 = vpack.c.b16 %v2496, %v2493
        %v2566 = vpack.c.b16 %v2497, %v2494
        %v2567 = vpack.c.b16 %v2501, %v2498
        %v2568 = vpack.c.b16 %v2502, %v2499
        %v2569 = vpack.c.b16 %v2503, %v2500
        %v2570 = vpack.c.b16 %v2507, %v2504
        %v2571 = vpack.c.b16 %v2508, %v2505
        %v2572 = vpack.c.b16 %v2509, %v2506
        %v2573 = vpack.c.b16 %v2513, %v2510
        %v2574 = vpack.c.b16 %v2514, %v2511
        %v2575 = vpack.c.b16 %v2515, %v2512
        %v2576 = vpack.c.b16 %v2519, %v2516
        %v2577 = vpack.c.b16 %v2520, %v2517
        %v2578 = vpack.c.b16 %v2521, %v2518
        %v2579 = vpack.c.b16 %v2525, %v2522
        %v2580 = vpack.c.b16 %v2526, %v2523
        %v2581 = vpack.c.b16 %v2527, %v2524
        %v2582 = vpack.c.b16 %v2531, %v2528
        %v2583 = vpack.c.b16 %v2532, %v2529
        %v2584 = vpack.c.b16 %v2533, %v2530
        %v2585 = vpack.c.b16 %v2537, %v2534
        %v2586 = vpack.c.b16 %v2538, %v2535
        %v2587 = vpack.c.b16 %v2539, %v2536
        %v2684 = vunpack.c.l.b16 %v2332
        %v2685 = vunpack.c.l.b16 %v2333
        %v2686 = vunpack.c.l.b16 %v2334
        %v2687 = vunpack.c.l.b16 %v2335
        %v2688 = vunpack.c.l.b16 %v2336
        %v2689 = vunpack.c.l.b16 %v2337
        %v2690 = vunpack.c.l.b16 %v2338
        %v2691 = vunpack.c.l.b16 %v2339
        %v2692 = vunpack.c.l.b16 %v2340
        %v2693 = vunpack.c.l.b16 %v2341
        %v2694 = vunpack.c.l.b16 %v2342
        %v2695 = vunpack.c.l.b16 %v2343
        %v2696 = vunpack.c.l.b16 %v2344
        %v2697 = vunpack.c.l.b16 %v2345
        %v2698 = vunpack.c.l.b16 %v2346
        %v2699 = vunpack.c.l.b16 %v2347
        %v2700 = vunpack.c.l.b16 %v2348
        %v2701 = vunpack.c.l.b16 %v2349
        %v2702 = vunpack.c.l.b16 %v2350
        %v2703 = vunpack.c.l.b16 %v2351
        %v2704 = vunpack.c.l.b16 %v2352
        %v2705 = vunpack.c.l.b16 %v2353
        %v2706 = vunpack.c.l.b16 %v2354
        %v2707 = vunpack.c.l.b16 %v2355
        %v2708 = vunpack.c.l.b16 %v2356
        %v2709 = vunpack.c.l.b16 %v2357
        %v2710 = vunpack.c.l.b16 %v2358
        %v2711 = vunpack.c.l.b16 %v2359
        %v2712 = vunpack.c.l.b16 %v2360
        %v2713 = vunpack.c.l.b16 %v2361
        %v2714 = vunpack.c.l.b16 %v2362
        %v2715 = vunpack.c.l.b16 %v2363
        %v2716 = vunpack.c.l.b16 %v2364
        %v2717 = vunpack.c.l.b16 %v2365
        %v2718 = vunpack.c.l.b16 %v2366
        %v2719 = vunpack.c.l.b16 %v2367
        %v2720 = vunpack.c.l.b16 %v2368
        %v2721 = vunpack.c.l.b16 %v2369
        %v2722 = vunpack.c.l.b16 %v2370
        %v2723 = vunpack.c.l.b16 %v2371
        %v2724 = vunpack.c.l.b16 %v2372
        %v2725 = vunpack.c.l.b16 %v2373
        %v2726 = vunpack.c.l.b16 %v2374
        %v2727 = vunpack.c.l.b16 %v2375
        %v2728 = vunpack.c.l.b16 %v2376
        %v2729 = vunpack.c.l.b16 %v2377
        %v2730 = vunpack.c.l.b16 %v2378
        %v2731 = vunpack.c.l.b16 %v2379
        %v2732 = vpack.c.b16 %v2685, %v2684
        %v2733 = vpack.c.b16 %v2687, %v2686
        %v2734 = vpack.c.b16 %v2689, %v2688
        %v2735 = vpack.c.b16 %v2691, %v2690
        %v2736 = vpack.c.b16 %v2693, %v2692
        %v2737 = vpack.c.b16 %v2695, %v2694
        %v2738 = vpack.c.b16 %v2697, %v2696
        %v2739 = vpack.c.b16 %v2699, %v2698
        %v2740 = vpack.c.b16 %v2701, %v2700
        %v2741 = vpack.c.b16 %v2703, %v2702
        %v2742 = vpack.c.b16 %v2705, %v2704
        %v2743 = vpack.c.b16 %v2707, %v2706
        %v2744 = vpack.c.b16 %v2709, %v2708
        %v2745 = vpack.c.b16 %v2711, %v2710
        %v2746 = vpack.c.b16 %v2713, %v2712
        %v2747 = vpack.c.b16 %v2715, %v2714
        %v2748 = vpack.c.b16 %v2717, %v2716
        %v2749 = vpack.c.b16 %v2719, %v2718
        %v2750 = vpack.c.b16 %v2721, %v2720
        %v2751 = vpack.c.b16 %v2723, %v2722
        %v2752 = vpack.c.b16 %v2725, %v2724
        %v2753 = vpack.c.b16 %v2727, %v2726
        %v2754 = vpack.c.b16 %v2729, %v2728
        %v2755 = vpack.c.b16 %v2731, %v2730
        %2780 = vmatpush.bf16.msra.mxu0 %v2739
        %2781 = vmatpush.bf16.msra.mxu0 %v2738
        %2782 = vmatpush.bf16.msra.mxu0 %v2737
        %2783 = vmatpush.bf16.msra.mxu0 %v2736
        %2784 = vmatpush.bf16.msra.mxu0 %v2735
        %2785 = vmatpush.bf16.msra.mxu0 %v2734
        %2786 = vmatpush.bf16.msra.mxu0 %v2733
        %2787 = vmatpush.bf16.msra.mxu0 %v2732
        %2788 = vmatmul.bf16.gmra.mxu0 %v2540
        %v2789 = vpop.f32.mrf.mxu0
        %v2790 = vadd.f32 0.0, %v2789
        %v2791 = vpop.f32.mrf.mxu0
        %v2792 = vadd.f32 0.0, %v2791
        %2793 = vmatmul.bf16.gmra.mxu0 %v2543
        %v2794 = vpop.f32.mrf.mxu0
        %v2795 = vadd.f32 0.0, %v2794
        %v2796 = vpop.f32.mrf.mxu0
        %v2797 = vadd.f32 0.0, %v2796
        %2798 = vmatmul.bf16.gmra.mxu0 %v2546
        %v2799 = vpop.f32.mrf.mxu0
        %v2800 = vadd.f32 0.0, %v2799
        %v2801 = vpop.f32.mrf.mxu0
        %v2802 = vadd.f32 0.0, %v2801
        %2803 = vmatmul.bf16.gmra.mxu0 %v2549
        %v2804 = vpop.f32.mrf.mxu0
        %v2805 = vadd.f32 0.0, %v2804
        %v2806 = vpop.f32.mrf.mxu0
        %v2807 = vadd.f32 0.0, %v2806
        %2808 = vmatmul.bf16.gmra.mxu0 %v2552
        %v2809 = vpop.f32.mrf.mxu0
        %v2810 = vadd.f32 0.0, %v2809
        %v2811 = vpop.f32.mrf.mxu0
        %v2812 = vadd.f32 0.0, %v2811
        %2813 = vmatmul.bf16.gmra.mxu0 %v2555
        %v2814 = vpop.f32.mrf.mxu0
        %v2815 = vadd.f32 0.0, %v2814
        %v2816 = vpop.f32.mrf.mxu0
        %v2817 = vadd.f32 0.0, %v2816
        %2818 = vmatmul.bf16.gmra.mxu0 %v2558
        %v2819 = vpop.f32.mrf.mxu0
        %v2820 = vadd.f32 0.0, %v2819
        %v2821 = vpop.f32.mrf.mxu0
        %v2822 = vadd.f32 0.0, %v2821
        %2823 = vmatmul.bf16.gmra.mxu0 %v2561
        %v2824 = vpop.f32.mrf.mxu0
        %v2825 = vadd.f32 0.0, %v2824
        %v2826 = vpop.f32.mrf.mxu0
        %v2827 = vadd.f32 0.0, %v2826
        %2828 = vmatmul.bf16.gmra.mxu0 %v2564
        %v2829 = vpop.f32.mrf.mxu0
        %v2830 = vadd.f32 0.0, %v2829
        %v2831 = vpop.f32.mrf.mxu0
        %v2832 = vadd.f32 0.0, %v2831
        %2833 = vmatmul.bf16.gmra.mxu0 %v2567
        %v2834 = vpop.f32.mrf.mxu0
        %v2835 = vadd.f32 0.0, %v2834
        %v2836 = vpop.f32.mrf.mxu0
        %v2837 = vadd.f32 0.0, %v2836
        %2838 = vmatmul.bf16.gmra.mxu0 %v2570
        %v2839 = vpop.f32.mrf.mxu0
        %v2840 = vadd.f32 0.0, %v2839
        %v2841 = vpop.f32.mrf.mxu0
        %v2842 = vadd.f32 0.0, %v2841
        %2843 = vmatmul.bf16.gmra.mxu0 %v2573
        %v2844 = vpop.f32.mrf.mxu0
        %v2845 = vadd.f32 0.0, %v2844
        %v2846 = vpop.f32.mrf.mxu0
        %v2847 = vadd.f32 0.0, %v2846
        %2848 = vmatmul.bf16.gmra.mxu0 %v2576
        %v2849 = vpop.f32.mrf.mxu0
        %v2850 = vadd.f32 0.0, %v2849
        %v2851 = vpop.f32.mrf.mxu0
        %v2852 = vadd.f32 0.0, %v2851
        %2853 = vmatmul.bf16.gmra.mxu0 %v2579
        %v2854 = vpop.f32.mrf.mxu0
        %v2855 = vadd.f32 0.0, %v2854
        %v2856 = vpop.f32.mrf.mxu0
        %v2857 = vadd.f32 0.0, %v2856
        %2858 = vmatmul.bf16.gmra.mxu0 %v2582
        %v2859 = vpop.f32.mrf.mxu0
        %v2860 = vadd.f32 0.0, %v2859
        %v2861 = vpop.f32.mrf.mxu0
        %v2862 = vadd.f32 0.0, %v2861
        %2863 = vmatmul.bf16.gmra.mxu0 %v2585
        %v2864 = vpop.f32.mrf.mxu0
        %v2865 = vadd.f32 0.0, %v2864
        %v2866 = vpop.f32.mrf.mxu0
        %v2867 = vadd.f32 0.0, %v2866
        %2868 = vdwg.mxu0
        %2869 = vmatpush.bf16.msra.mxu0 %v2747
        %2870 = vmatpush.bf16.msra.mxu0 %v2746
        %2871 = vmatpush.bf16.msra.mxu0 %v2745
        %2872 = vmatpush.bf16.msra.mxu0 %v2744
        %2873 = vmatpush.bf16.msra.mxu0 %v2743
        %2874 = vmatpush.bf16.msra.mxu0 %v2742
        %2875 = vmatpush.bf16.msra.mxu0 %v2741
        %2876 = vmatpush.bf16.msra.mxu0 %v2740
        %2877 = vmatmul.bf16.gmra.mxu0 %v2541
        %v2878 = vpop.f32.mrf.mxu0
        %v2879 = vadd.f32 %v2790, %v2878
        %v2880 = vpop.f32.mrf.mxu0
        %v2881 = vadd.f32 %v2792, %v2880
        %2882 = vmatmul.bf16.gmra.mxu0 %v2544
        %v2883 = vpop.f32.mrf.mxu0
        %v2884 = vadd.f32 %v2795, %v2883
        %v2885 = vpop.f32.mrf.mxu0
        %v2886 = vadd.f32 %v2797, %v2885
        %2887 = vmatmul.bf16.gmra.mxu0 %v2547
        %v2888 = vpop.f32.mrf.mxu0
        %v2889 = vadd.f32 %v2800, %v2888
        %v2890 = vpop.f32.mrf.mxu0
        %v2891 = vadd.f32 %v2802, %v2890
        %2892 = vmatmul.bf16.gmra.mxu0 %v2550
        %v2893 = vpop.f32.mrf.mxu0
        %v2894 = vadd.f32 %v2805, %v2893
        %v2895 = vpop.f32.mrf.mxu0
        %v2896 = vadd.f32 %v2807, %v2895
        %2897 = vmatmul.bf16.gmra.mxu0 %v2553
        %v2898 = vpop.f32.mrf.mxu0
        %v2899 = vadd.f32 %v2810, %v2898
        %v2900 = vpop.f32.mrf.mxu0
        %v2901 = vadd.f32 %v2812, %v2900
        %2902 = vmatmul.bf16.gmra.mxu0 %v2556
        %v2903 = vpop.f32.mrf.mxu0
        %v2904 = vadd.f32 %v2815, %v2903
        %v2905 = vpop.f32.mrf.mxu0
        %v2906 = vadd.f32 %v2817, %v2905
        %2907 = vmatmul.bf16.gmra.mxu0 %v2559
        %v2908 = vpop.f32.mrf.mxu0
        %v2909 = vadd.f32 %v2820, %v2908
        %v2910 = vpop.f32.mrf.mxu0
        %v2911 = vadd.f32 %v2822, %v2910
        %2912 = vmatmul.bf16.gmra.mxu0 %v2562
        %v2913 = vpop.f32.mrf.mxu0
        %v2914 = vadd.f32 %v2825, %v2913
        %v2915 = vpop.f32.mrf.mxu0
        %v2916 = vadd.f32 %v2827, %v2915
        %2917 = vmatmul.bf16.gmra.mxu0 %v2565
        %v2918 = vpop.f32.mrf.mxu0
        %v2919 = vadd.f32 %v2830, %v2918
        %v2920 = vpop.f32.mrf.mxu0
        %v2921 = vadd.f32 %v2832, %v2920
        %2922 = vmatmul.bf16.gmra.mxu0 %v2568
        %v2923 = vpop.f32.mrf.mxu0
        %v2924 = vadd.f32 %v2835, %v2923
        %v2925 = vpop.f32.mrf.mxu0
        %v2926 = vadd.f32 %v2837, %v2925
        %2927 = vmatmul.bf16.gmra.mxu0 %v2571
        %v2928 = vpop.f32.mrf.mxu0
        %v2929 = vadd.f32 %v2840, %v2928
        %v2930 = vpop.f32.mrf.mxu0
        %v2931 = vadd.f32 %v2842, %v2930
        %2932 = vmatmul.bf16.gmra.mxu0 %v2574
        %v2933 = vpop.f32.mrf.mxu0
        %v2934 = vadd.f32 %v2845, %v2933
        %v2935 = vpop.f32.mrf.mxu0
        %v2936 = vadd.f32 %v2847, %v2935
        %2937 = vmatmul.bf16.gmra.mxu0 %v2577
        %v2938 = vpop.f32.mrf.mxu0
        %v2939 = vadd.f32 %v2850, %v2938
        %v2940 = vpop.f32.mrf.mxu0
        %v2941 = vadd.f32 %v2852, %v2940
        %2942 = vmatmul.bf16.gmra.mxu0 %v2580
        %v2943 = vpop.f32.mrf.mxu0
        %v2944 = vadd.f32 %v2855, %v2943
        %v2945 = vpop.f32.mrf.mxu0
        %v2946 = vadd.f32 %v2857, %v2945
        %2947 = vmatmul.bf16.gmra.mxu0 %v2583
        %v2948 = vpop.f32.mrf.mxu0
        %v2949 = vadd.f32 %v2860, %v2948
        %v2950 = vpop.f32.mrf.mxu0
        %v2951 = vadd.f32 %v2862, %v2950
        %2952 = vmatmul.bf16.gmra.mxu0 %v2586
        %v2953 = vpop.f32.mrf.mxu0
        %v2954 = vadd.f32 %v2865, %v2953
        %v2955 = vpop.f32.mrf.mxu0
        %v2956 = vadd.f32 %v2867, %v2955
        %2957 = vdwg.mxu0
        %2958 = vmatpush.bf16.msra.mxu0 %v2755
        %2959 = vmatpush.bf16.msra.mxu0 %v2754
        %2960 = vmatpush.bf16.msra.mxu0 %v2753
        %2961 = vmatpush.bf16.msra.mxu0 %v2752
        %2962 = vmatpush.bf16.msra.mxu0 %v2751
        %2963 = vmatpush.bf16.msra.mxu0 %v2750
        %2964 = vmatpush.bf16.msra.mxu0 %v2749
        %2965 = vmatpush.bf16.msra.mxu0 %v2748
        %2966 = vmatmul.bf16.gmra.mxu0 %v2542
        %v2967 = vpop.f32.mrf.mxu0
        %v2968 = vadd.f32 %v2879, %v2967
        %v2969 = vpop.f32.mrf.mxu0
        %v2970 = vadd.f32 %v2881, %v2969
        %2971 = vmatmul.bf16.gmra.mxu0 %v2545
        %v2972 = vpop.f32.mrf.mxu0
        %v2973 = vadd.f32 %v2884, %v2972
        %v2974 = vpop.f32.mrf.mxu0
        %v2975 = vadd.f32 %v2886, %v2974
        %2976 = vmatmul.bf16.gmra.mxu0 %v2548
        %v2977 = vpop.f32.mrf.mxu0
        %v2978 = vadd.f32 %v2889, %v2977
        %v2979 = vpop.f32.mrf.mxu0
        %v2980 = vadd.f32 %v2891, %v2979
        %2981 = vmatmul.bf16.gmra.mxu0 %v2551
        %v2982 = vpop.f32.mrf.mxu0
        %v2983 = vadd.f32 %v2894, %v2982
        %v2984 = vpop.f32.mrf.mxu0
        %v2985 = vadd.f32 %v2896, %v2984
        %2986 = vmatmul.bf16.gmra.mxu0 %v2554
        %v2987 = vpop.f32.mrf.mxu0
        %v2988 = vadd.f32 %v2899, %v2987
        %v2989 = vpop.f32.mrf.mxu0
        %v2990 = vadd.f32 %v2901, %v2989
        %2991 = vmatmul.bf16.gmra.mxu0 %v2557
        %v2992 = vpop.f32.mrf.mxu0
        %v2993 = vadd.f32 %v2904, %v2992
        %v2994 = vpop.f32.mrf.mxu0
        %v2995 = vadd.f32 %v2906, %v2994
        %2996 = vmatmul.bf16.gmra.mxu0 %v2560
        %v2997 = vpop.f32.mrf.mxu0
        %v2998 = vadd.f32 %v2909, %v2997
        %v2999 = vpop.f32.mrf.mxu0
        %v3000 = vadd.f32 %v2911, %v2999
        %3001 = vmatmul.bf16.gmra.mxu0 %v2563
        %v3002 = vpop.f32.mrf.mxu0
        %v3003 = vadd.f32 %v2914, %v3002
        %v3004 = vpop.f32.mrf.mxu0
        %v3005 = vadd.f32 %v2916, %v3004
        %3006 = vmatmul.bf16.gmra.mxu0 %v2566
        %v3007 = vpop.f32.mrf.mxu0
        %v3008 = vadd.f32 %v2919, %v3007
        %v3009 = vpop.f32.mrf.mxu0
        %v3010 = vadd.f32 %v2921, %v3009
        %3011 = vmatmul.bf16.gmra.mxu0 %v2569
        %v3012 = vpop.f32.mrf.mxu0
        %v3013 = vadd.f32 %v2924, %v3012
        %v3014 = vpop.f32.mrf.mxu0
        %v3015 = vadd.f32 %v2926, %v3014
        %3016 = vmatmul.bf16.gmra.mxu0 %v2572
        %v3017 = vpop.f32.mrf.mxu0
        %v3018 = vadd.f32 %v2929, %v3017
        %v3019 = vpop.f32.mrf.mxu0
        %v3020 = vadd.f32 %v2931, %v3019
        %3021 = vmatmul.bf16.gmra.mxu0 %v2575
        %v3022 = vpop.f32.mrf.mxu0
        %v3023 = vadd.f32 %v2934, %v3022
        %v3024 = vpop.f32.mrf.mxu0
        %v3025 = vadd.f32 %v2936, %v3024
        %3026 = vmatmul.bf16.gmra.mxu0 %v2578
        %v3027 = vpop.f32.mrf.mxu0
        %v3028 = vadd.f32 %v2939, %v3027
        %v3029 = vpop.f32.mrf.mxu0
        %v3030 = vadd.f32 %v2941, %v3029
        %3031 = vmatmul.bf16.gmra.mxu0 %v2581
        %v3032 = vpop.f32.mrf.mxu0
        %v3033 = vadd.f32 %v2944, %v3032
        %v3034 = vpop.f32.mrf.mxu0
        %v3035 = vadd.f32 %v2946, %v3034
        %3036 = vmatmul.bf16.gmra.mxu0 %v2584
        %v3037 = vpop.f32.mrf.mxu0
        %v3038 = vadd.f32 %v2949, %v3037
        %v3039 = vpop.f32.mrf.mxu0
        %v3040 = vadd.f32 %v2951, %v3039
        %3041 = vmatmul.bf16.gmra.mxu0 %v2587
        %v3042 = vpop.f32.mrf.mxu0
        %v3043 = vadd.f32 %v2954, %v3042
        %v3044 = vpop.f32.mrf.mxu0
        %v3045 = vadd.f32 %v2956, %v3044
        %3046 = vdwg.mxu0
        %v3047 = vadd.f32 %v2187, %v2968
        %v3048 = vadd.f32 %v2189, %v2970
        %v3049 = vadd.f32 %v2192, %v2973
        %v3050 = vadd.f32 %v2194, %v2975
        %v3051 = vadd.f32 %v2197, %v2978
        %v3052 = vadd.f32 %v2199, %v2980
        %v3053 = vadd.f32 %v2202, %v2983
        %v3054 = vadd.f32 %v2204, %v2985
        %v3055 = vadd.f32 %v2207, %v2988
        %v3056 = vadd.f32 %v2209, %v2990
        %v3057 = vadd.f32 %v2212, %v2993
        %v3058 = vadd.f32 %v2214, %v2995
        %v3059 = vadd.f32 %v2217, %v2998
        %v3060 = vadd.f32 %v2219, %v3000
        %v3061 = vadd.f32 %v2222, %v3003
        %v3062 = vadd.f32 %v2224, %v3005
        %v3063 = vadd.f32 %v2227, %v3008
        %v3064 = vadd.f32 %v2229, %v3010
        %v3065 = vadd.f32 %v2232, %v3013
        %v3066 = vadd.f32 %v2234, %v3015
        %v3067 = vadd.f32 %v2237, %v3018
        %v3068 = vadd.f32 %v2239, %v3020
        %v3069 = vadd.f32 %v2242, %v3023
        %v3070 = vadd.f32 %v2244, %v3025
        %v3071 = vadd.f32 %v2247, %v3028
        %v3072 = vadd.f32 %v2249, %v3030
        %v3073 = vadd.f32 %v2252, %v3033
        %v3074 = vadd.f32 %v2254, %v3035
        %v3075 = vadd.f32 %v2257, %v3038
        %v3076 = vadd.f32 %v2259, %v3040
        %v3077 = vadd.f32 %v2262, %v3043
        %v3078 = vadd.f32 %v2264, %v3045
        %v3079 = vld [vmem:[%s2] sm:$0x1]
        %v3081 = vperm.slane %v3079, 0
        %v3083 = vadd.f32 %v3047, %v3081
        %v3084 = vadd.f32 %v3048, %v3081
        %v3085 = vadd.f32 %v3049, %v3081
        %v3086 = vadd.f32 %v3050, %v3081
        %v3087 = vadd.f32 %v3051, %v3081
        %v3088 = vadd.f32 %v3052, %v3081
        %v3089 = vadd.f32 %v3053, %v3081
        %v3090 = vadd.f32 %v3054, %v3081
        %v3091 = vadd.f32 %v3055, %v3081
        %v3092 = vadd.f32 %v3056, %v3081
        %v3093 = vadd.f32 %v3057, %v3081
        %v3094 = vadd.f32 %v3058, %v3081
        %v3095 = vadd.f32 %v3059, %v3081
        %v3096 = vadd.f32 %v3060, %v3081
        %v3097 = vadd.f32 %v3061, %v3081
        %v3098 = vadd.f32 %v3062, %v3081
        %v3099 = vadd.f32 %v3063, %v3081
        %v3100 = vadd.f32 %v3064, %v3081
        %v3101 = vadd.f32 %v3065, %v3081
        %v3102 = vadd.f32 %v3066, %v3081
        %v3103 = vadd.f32 %v3067, %v3081
        %v3104 = vadd.f32 %v3068, %v3081
        %v3105 = vadd.f32 %v3069, %v3081
        %v3106 = vadd.f32 %v3070, %v3081
        %v3107 = vadd.f32 %v3071, %v3081
        %v3108 = vadd.f32 %v3072, %v3081
        %v3109 = vadd.f32 %v3073, %v3081
        %v3110 = vadd.f32 %v3074, %v3081
        %v3111 = vadd.f32 %v3075, %v3081
        %v3112 = vadd.f32 %v3076, %v3081
        %v3113 = vadd.f32 %v3077, %v3081
        %v3114 = vadd.f32 %v3078, %v3081
        %v3115 = vpack.c.bf16 %v3083, %v3083
        %v3116 = vpack.c.bf16 %v3084, %v3084
        %v3117 = vpack.c.bf16 %v3085, %v3085
        %v3118 = vpack.c.bf16 %v3086, %v3086
        %v3119 = vpack.c.bf16 %v3087, %v3087
        %v3120 = vpack.c.bf16 %v3088, %v3088
        %v3121 = vpack.c.bf16 %v3089, %v3089
        %v3122 = vpack.c.bf16 %v3090, %v3090
        %v3123 = vpack.c.bf16 %v3091, %v3091
        %v3124 = vpack.c.bf16 %v3092, %v3092
        %v3125 = vpack.c.bf16 %v3093, %v3093
        %v3126 = vpack.c.bf16 %v3094, %v3094
        %v3127 = vpack.c.bf16 %v3095, %v3095
        %v3128 = vpack.c.bf16 %v3096, %v3096
        %v3129 = vpack.c.bf16 %v3097, %v3097
        %v3130 = vpack.c.bf16 %v3098, %v3098
        %v3131 = vpack.c.bf16 %v3099, %v3099
        %v3132 = vpack.c.bf16 %v3100, %v3100
        %v3133 = vpack.c.bf16 %v3101, %v3101
        %v3134 = vpack.c.bf16 %v3102, %v3102
        %v3135 = vpack.c.bf16 %v3103, %v3103
        %v3136 = vpack.c.bf16 %v3104, %v3104
        %v3137 = vpack.c.bf16 %v3105, %v3105
        %v3138 = vpack.c.bf16 %v3106, %v3106
        %v3139 = vpack.c.bf16 %v3107, %v3107
        %v3140 = vpack.c.bf16 %v3108, %v3108
        %v3141 = vpack.c.bf16 %v3109, %v3109
        %v3142 = vpack.c.bf16 %v3110, %v3110
        %v3143 = vpack.c.bf16 %v3111, %v3111
        %v3144 = vpack.c.bf16 %v3112, %v3112
        %v3145 = vpack.c.bf16 %v3113, %v3113
        %v3146 = vpack.c.bf16 %v3114, %v3114
        %3147 = vst [vmem:[%s238] sm:$0xf] %v3115
        %3148 = vst [vmem:[%s238 + $0x4] sm:$0xf] %v3116
        %3149 = vst [vmem:[%s238 + $0x8] sm:$0xf] %v3117
        %3150 = vst [vmem:[%s238 + $0xc] sm:$0xf] %v3118
        %3151 = vst [vmem:[%s238 + $0x10] sm:$0xf] %v3119
        %3152 = vst [vmem:[%s238 + $0x14] sm:$0xf] %v3120
        %3153 = vst [vmem:[%s238 + $0x18] sm:$0xf] %v3121
        %3154 = vst [vmem:[%s238 + $0x1c] sm:$0xf] %v3122
        %3155 = vst [vmem:[%s238 + $0x20] sm:$0xf] %v3123
        %3156 = vst [vmem:[%s238 + $0x24] sm:$0xf] %v3124
        %3157 = vst [vmem:[%s238 + $0x28] sm:$0xf] %v3125
        %3158 = vst [vmem:[%s238 + $0x2c] sm:$0xf] %v3126
        %3159 = vst [vmem:[%s238 + $0x30] sm:$0xf] %v3127
        %3160 = vst [vmem:[%s238 + $0x34] sm:$0xf] %v3128
        %3161 = vst [vmem:[%s238 + $0x38] sm:$0xf] %v3129
        %3162 = vst [vmem:[%s238 + $0x3c] sm:$0xf] %v3130
        %3163 = vst [vmem:[%s238 + $0x40] sm:$0xf] %v3131
        %3164 = vst [vmem:[%s238 + $0x44] sm:$0xf] %v3132
        %3165 = vst [vmem:[%s238 + $0x48] sm:$0xf] %v3133
        %3166 = vst [vmem:[%s238 + $0x4c] sm:$0xf] %v3134
        %3167 = vst [vmem:[%s238 + $0x50] sm:$0xf] %v3135
        %3168 = vst [vmem:[%s238 + $0x54] sm:$0xf] %v3136
        %3169 = vst [vmem:[%s238 + $0x58] sm:$0xf] %v3137
        %3170 = vst [vmem:[%s238 + $0x5c] sm:$0xf] %v3138
        %3171 = vst [vmem:[%s238 + $0x60] sm:$0xf] %v3139
        %3172 = vst [vmem:[%s238 + $0x64] sm:$0xf] %v3140
        %3173 = vst [vmem:[%s238 + $0x68] sm:$0xf] %v3141
        %3174 = vst [vmem:[%s238 + $0x6c] sm:$0xf] %v3142
        %3175 = vst [vmem:[%s238 + $0x70] sm:$0xf] %v3143
        %3176 = vst [vmem:[%s238 + $0x74] sm:$0xf] %v3144
        %3177 = vst [vmem:[%s238 + $0x78] sm:$0xf] %v3145
        %3178 = vst [vmem:[%s238 + $0x7c] sm:$0xf] %v3146
        %v3179 = vadd.f32 %v3083, %v3084
        %v3180 = vadd.f32 %v3179, %v3085
        %v3181 = vadd.f32 %v3180, %v3086
        %v3182 = vadd.f32 %v3181, %v3087
        %v3183 = vadd.f32 %v3182, %v3088
        %v3184 = vadd.f32 %v3183, %v3089
        %v3185 = vadd.f32 %v3184, %v3090
        %v3186 = vadd.f32 %v3185, %v3091
        %v3187 = vadd.f32 %v3186, %v3092
        %v3188 = vadd.f32 %v3187, %v3093
        %v3189 = vadd.f32 %v3188, %v3094
        %v3190 = vadd.f32 %v3189, %v3095
        %v3191 = vadd.f32 %v3190, %v3096
        %v3192 = vadd.f32 %v3191, %v3097
        %v3193 = vadd.f32 %v3192, %v3098
        %v3194 = vadd.f32 %v3193, %v3099
        %v3195 = vadd.f32 %v3194, %v3100
        %v3196 = vadd.f32 %v3195, %v3101
        %v3197 = vadd.f32 %v3196, %v3102
        %v3198 = vadd.f32 %v3197, %v3103
        %v3199 = vadd.f32 %v3198, %v3104
        %v3200 = vadd.f32 %v3199, %v3105
        %v3201 = vadd.f32 %v3200, %v3106
        %v3202 = vadd.f32 %v3201, %v3107
        %v3203 = vadd.f32 %v3202, %v3108
        %v3204 = vadd.f32 %v3203, %v3109
        %v3205 = vadd.f32 %v3204, %v3110
        %v3206 = vadd.f32 %v3205, %v3111
        %v3207 = vadd.f32 %v3206, %v3112
        %v3208 = vadd.f32 %v3207, %v3113
        %v3209 = vadd.f32 %v3208, %v3114
        %v3210 = vrot.slane %v3209, 4
        %v3211 = vadd.f32 %v3209, %v3210
        %v3212 = vrot.slane %v3211, 2
        %v3213 = vadd.f32 %v3211, %v3212
        %v3214 = vrot.slane %v3213, 1
        %v3215 = vadd.f32 %v3213, %v3214
        %v3216 = vmul.f32 %v3083, %v3083
        %v3217 = vmul.f32 %v3084, %v3084
        %v3218 = vmul.f32 %v3085, %v3085
        %v3219 = vmul.f32 %v3086, %v3086
        %v3220 = vmul.f32 %v3087, %v3087
        %v3221 = vmul.f32 %v3088, %v3088
        %v3222 = vmul.f32 %v3089, %v3089
        %v3223 = vmul.f32 %v3090, %v3090
        %v3224 = vmul.f32 %v3091, %v3091
        %v3225 = vmul.f32 %v3092, %v3092
        %v3226 = vmul.f32 %v3093, %v3093
        %v3227 = vmul.f32 %v3094, %v3094
        %v3228 = vmul.f32 %v3095, %v3095
        %v3229 = vmul.f32 %v3096, %v3096
        %v3230 = vmul.f32 %v3097, %v3097
        %v3231 = vmul.f32 %v3098, %v3098
        %v3232 = vmul.f32 %v3099, %v3099
        %v3233 = vmul.f32 %v3100, %v3100
        %v3234 = vmul.f32 %v3101, %v3101
        %v3235 = vmul.f32 %v3102, %v3102
        %v3236 = vmul.f32 %v3103, %v3103
        %v3237 = vmul.f32 %v3104, %v3104
        %v3238 = vmul.f32 %v3105, %v3105
        %v3239 = vmul.f32 %v3106, %v3106
        %v3240 = vmul.f32 %v3107, %v3107
        %v3241 = vmul.f32 %v3108, %v3108
        %v3242 = vmul.f32 %v3109, %v3109
        %v3243 = vmul.f32 %v3110, %v3110
        %v3244 = vmul.f32 %v3111, %v3111
        %v3245 = vmul.f32 %v3112, %v3112
        %v3246 = vmul.f32 %v3113, %v3113
        %v3247 = vmul.f32 %v3114, %v3114
        %v3248 = vadd.f32 %v3216, %v3217
        %v3249 = vadd.f32 %v3248, %v3218
        %v3250 = vadd.f32 %v3249, %v3219
        %v3251 = vadd.f32 %v3250, %v3220
        %v3252 = vadd.f32 %v3251, %v3221
        %v3253 = vadd.f32 %v3252, %v3222
        %v3254 = vadd.f32 %v3253, %v3223
        %v3255 = vadd.f32 %v3254, %v3224
        %v3256 = vadd.f32 %v3255, %v3225
        %v3257 = vadd.f32 %v3256, %v3226
        %v3258 = vadd.f32 %v3257, %v3227
        %v3259 = vadd.f32 %v3258, %v3228
        %v3260 = vadd.f32 %v3259, %v3229
        %v3261 = vadd.f32 %v3260, %v3230
        %v3262 = vadd.f32 %v3261, %v3231
        %v3263 = vadd.f32 %v3262, %v3232
        %v3264 = vadd.f32 %v3263, %v3233
        %v3265 = vadd.f32 %v3264, %v3234
        %v3266 = vadd.f32 %v3265, %v3235
        %v3267 = vadd.f32 %v3266, %v3236
        %v3268 = vadd.f32 %v3267, %v3237
        %v3269 = vadd.f32 %v3268, %v3238
        %v3270 = vadd.f32 %v3269, %v3239
        %v3271 = vadd.f32 %v3270, %v3240
        %v3272 = vadd.f32 %v3271, %v3241
        %v3273 = vadd.f32 %v3272, %v3242
        %v3274 = vadd.f32 %v3273, %v3243
        %v3275 = vadd.f32 %v3274, %v3244
        %v3276 = vadd.f32 %v3275, %v3245
        %v3277 = vadd.f32 %v3276, %v3246
        %v3278 = vadd.f32 %v3277, %v3247
        %v3279 = vrot.slane %v3278, 4
        %v3280 = vadd.f32 %v3278, %v3279
        %v3281 = vrot.slane %v3280, 2
        %v3282 = vadd.f32 %v3280, %v3281
        %v3283 = vrot.slane %v3282, 1
        %v3284 = vadd.f32 %v3282, %v3283
        %v3285 = vsel %vm343, %v3215, %v3284
        %3286 = vst [vmem:[%s245] sm:$0x3] %v3285
        %s3287 = sand.u32 %s102, 1
        %s3288 = scalar_lea.sflag [#allocation5], %s3287
        %s3289 = sand.u32 %s102, 1
        %s3290 = smul.addr %s3289, 128
        %s3291 = scalar_lea.vmem [#allocation8], %s3290
        %s3292 = sand.u32 %s128, 1
        %s3293 = scalar_lea.sflag [#allocation10], %s3292
        %s3294 = sand.u32 %s128, 1
        %s3295 = smul.addr %s3294, 2
        %s3296 = scalar_lea.vmem [#allocation9], %s3295
        // Predicated region
        $region41: #{tpu_custom_call.1} parent=31 // pred_check
          %p3297 = pneg %p112
        $region42: #{tpu_custom_call.1} parent=31 // pred_check_branch
          %3299 = sbr.rel (%p3297) target = $region44
        $region43: #{tpu_custom_call.1} parent=31 // pred_region
          %3301 = vsyncadd %s3288, 0
          %s3302 = smul.addr %s26, 32
          %s3303 = smul.addr %s3302, 4
          %s3304 = scalar_lea.hbm %s3, %s3303
          %s3305 = sshll.u32 %s3291, 4
          %s3306 = int_to_ptr.vmem [resolvable:$true] %s3305
          %s3307 = sshll.u32 %s3304, 4
          %s3308 = int_to_ptr.hbm [resolvable:$true] %s3307
          %3313 = dma.vmem_to_hbm [thread:$0]  %s3306, 2048, %s3308, %s3288, 64, 64, 4
        $region44: #{tpu_custom_call.1} parent=31 // pred_fallthru
          _
        // Predicated region
        $region45: #{tpu_custom_call.1} parent=31 // pred_check
          %p3314 = pneg %p138
        $region46: #{tpu_custom_call.1} parent=31 // pred_check_branch
          %3316 = sbr.rel (%p3314) target = $region48
        $region47: #{tpu_custom_call.1} parent=31 // pred_region
          %3318 = vsyncadd %s3293, 0
          %s3319 = smul.addr %s26, 2
          %s3320 = scalar_lea.hbm %s4, %s3319
          %s3322 = sshll.u32 %s3296, 4
          %s3323 = int_to_ptr.vmem [resolvable:$true] %s3322
          %s3324 = sshll.u32 %s3320, 4
          %s3325 = int_to_ptr.hbm [resolvable:$true] %s3324
          %3327 = dma.vmem_to_hbm [thread:$0]  %s3323, 32, %s3325, %s3293
        $region48: #{tpu_custom_call.1} parent=31 // pred_fallthru
          _
      $region32: #{tpu_custom_call.1} parent=5 // pred_fallthru
        _
      %p3328 = scmp.le.s32.totalorder 2, %s21
      // Predicated region
      $region49: #{tpu_custom_call.1} parent=5 // pred_check
        %p3329 = pneg %p3328
      $region50: #{tpu_custom_call.1} parent=5 // pred_check_branch
        %3331 = sbr.rel (%p3329) target = $region52
      $region51: #{tpu_custom_call.1} parent=5 // pred_region
        %s3332 = ssub.s32 %s21, 2
        // Predicated region
        $region53: #{tpu_custom_call.1} parent=51 // pred_check
          %p3333 = pneg %p118
        $region54: #{tpu_custom_call.1} parent=51 // pred_check_branch
          %3335 = sbr.rel (%p3333) target = $region56
        $region55: #{tpu_custom_call.1} parent=51 // pred_region
          %s3336 = sand.u32 %s103, 1
          %s3337 = scalar_lea.sflag [#allocation5], %s3336
          %s3338 = sand.u32 %s103, 1
          %s3339 = smul.addr %s3338, 128
          %s3340 = scalar_lea.vmem [#allocation8], %s3339
          %3342 = dma.done %s3337, 2048
        $region56: #{tpu_custom_call.1} parent=51 // pred_fallthru
          _
        // Predicated region
        $region57: #{tpu_custom_call.1} parent=51 // pred_check
          %p3343 = pneg %p144
        $region58: #{tpu_custom_call.1} parent=51 // pred_check_branch
          %3345 = sbr.rel (%p3343) target = $region60
        $region59: #{tpu_custom_call.1} parent=51 // pred_region
          %s3346 = sand.u32 %s129, 1
          %s3347 = scalar_lea.sflag [#allocation10], %s3346
          %s3348 = sand.u32 %s129, 1
          %s3349 = smul.addr %s3348, 2
          %s3350 = scalar_lea.vmem [#allocation9], %s3349
          %3352 = dma.done %s3347, 32
        $region60: #{tpu_custom_call.1} parent=51 // pred_fallthru
          _
      $region52: #{tpu_custom_call.1} parent=5 // pred_fallthru
        _
    $region6: #{tpu_custom_call.1} parent=1 // loop_footer
      %s25 = sadd.s32 1, %s21
    $region7: #{tpu_custom_call.1} parent=1 // loop_footer_branch
      %20 = sbr.rel target = $region3
    $region8: #{tpu_custom_call.1} parent=1 // loop_exit
      _
    %3353 = vsyncpa [#allocation4], 1
    %s3354 = scalar_lea.sflag [#allocation4], 1
    %3355 = vsyncpa %s3354, 1
    %3356 = vsyncpa [#allocation7], 1
    %3357 = vsyncpa [#allocation5], 1
    %s3358 = scalar_lea.sflag [#allocation5], 1
    %3359 = vsyncpa %s3358, 1
    %3360 = vsyncpa [#allocation10], 1
    %s3361 = scalar_lea.sflag [#allocation10], 1
    %3362 = vsyncpa %s3361, 1

</llo_original>
